<compile_context>
chip_gen: v6e
topology: v6e:2x2x1
jax: 0.10.0
libtpu: 0.0.40
codegen_flags: <defaults>
</compile_context>

<pallas_src>
import numpy as np
import jax
import jax.numpy as jnp
from jax import lax
from jax.experimental import pallas as pl
from jax.experimental.pallas import tpu as pltpu


def _round_up(x, m):
    return (x + m - 1) // m * m


# ----------------------------------------------------------------------------
# Fused lattice-LSTM sweep kernel: one grid step == one MultiInputLSTMCell step
# ----------------------------------------------------------------------------
def _fused_lattice_lstm_kernel(c_counts_ref,           # SMEM (T,) int32 (scalar prefetch)
                               x_ref,                   # (1, 1, Dp)   per-step input
                               h0_ref, c0_ref,          # (1, Hp)      initial state
                               cw_ref,                  # (1, C_max, Hp) word cells at t
                               wih_ref,                 # (Dp, 3*Hp)   resident weights
                               whh_ref,                 # (Hp, 3*Hp)
                               b_ref,                   # (1, 3*Hp)
                               awih_ref,                # (Dp, Hp)
                               awhh_ref,                # (Hp, Hp)
                               ab_ref,                  # (1, Hp)
                               h_out_ref, c_out_ref,    # (1, 1, Hp)
                               h_state, c_state):       # VMEM scratch (1, Hp)
    t = pl.program_id(0)
    Hp = h_state.shape[1]

    # Carry (h, c) across grid steps in VMEM scratch; init at step 0.
    @pl.when(t == 0)
    def _():
        h_state[...] = h0_ref[...]
        c_state[...] = c0_ref[...]

    x = x_ref[0]                       # (1, Dp)
    h_prev = h_state[...]              # (1, Hp)

    # Gate pre-activations: two MXU dots on resident weights (no lane concat).
    # Gate slices are lane-aligned because each gate block was padded to Hp=128.
    gates = (jnp.dot(x, wih_ref[...], preferred_element_type=jnp.float32)
             + jnp.dot(h_prev, whh_ref[...], preferred_element_type=jnp.float32)
             + b_ref[...])
    i = jax.nn.sigmoid(gates[:, 0:Hp])
    o = jax.nn.sigmoid(gates[:, Hp:2 * Hp])
    g = jnp.tanh(gates[:, 2 * Hp:3 * Hp])

    c_num = c_counts_ref[t]

    @pl.when(c_num == 0)
    def _():
        # Coupled input/forget gate update.
        c_state[...] = (1.0 - i) * c_state[...] + i * g

    @pl.when(c_num > 0)
    def _():
        # Word-cell attention: softmax over the C valid rows plus the i gate.
        c_in = cw_ref[0]                                            # (C_max, Hp)
        alpha = jax.nn.sigmoid(
            jnp.dot(x, awih_ref[...], preferred_element_type=jnp.float32)
            + ab_ref[...]
            + jnp.dot(c_in, awhh_ref[...], preferred_element_type=jnp.float32))
        row = lax.broadcasted_iota(jnp.int32, alpha.shape, 0)
        exp_i = jnp.exp(i)                                          # (1, Hp)
        exp_a = jnp.where(row < c_num, jnp.exp(alpha), 0.0)         # mask pad rows
        denom = exp_i + jnp.sum(exp_a, axis=0, keepdims=True)
        inv = pl.reciprocal(denom, approx=True)                     # EUP slot
        c_state[...] = (exp_i * g
                        + jnp.sum(exp_a * c_in, axis=0, keepdims=True)) * inv

    c1 = c_state[...]
    h1 = o * jnp.tanh(c1)
    h_state[...] = h1
    h_out_ref[0] = h1
    c_out_ref[0] = c1


# ----------------------------------------------------------------------------
# Host-side padding helpers
# ----------------------------------------------------------------------------
def _pad2(a, rows, cols):
    return jnp.pad(a, ((0, rows - a.shape[0]), (0, cols - a.shape[1])))


def _prepare_padded_params(params, H, Dp, Hp):
    def pad_gate_weight(w, rows_p):
        parts = jnp.split(w, 3, axis=1)               # per-gate (rows, H)
        return jnp.concatenate([_pad2(p, rows_p, Hp) for p in parts], axis=1)

    w_ih = pad_gate_weight(params["weight_ih"], Dp)   # (Dp, 3*Hp)
    w_hh = pad_gate_weight(params["weight_hh"], Hp)   # (Hp, 3*Hp)
    b_parts = jnp.split(params["bias"], 3)
    b = jnp.concatenate([jnp.pad(p, (0, Hp - H)) for p in b_parts]).reshape(1, 3 * Hp)
    aw_ih = _pad2(params["alpha_weight_ih"], Dp, Hp)
    aw_hh = _pad2(params["alpha_weight_hh"], Hp, Hp)
    ab = jnp.pad(params["alpha_bias"], (0, Hp - H)).reshape(1, Hp)
    return w_ih, w_hh, b, aw_ih, aw_hh, ab


# ----------------------------------------------------------------------------
# Fused sweep over T timesteps in ONE pallas_call
# ----------------------------------------------------------------------------
def lattice_lstm_sweep(params, xs, c_words, c_counts, hx):
    """
    xs       : (T, input_size) float32, one row per timestep
    c_words  : (T, C_max_in, hidden) float32, padded word cells per step
    c_counts : (T,) int32, number of valid word cells per step (0 allowed)
    hx       : (h_0, c_0), each (1, hidden)
    returns  : (hs, cs) each (T, hidden) — state after each step
    """
    h0, c0 = hx
    assert h0.shape[0] == 1 and c0.shape[0] == 1
    T, D = xs.shape
    H = h0.shape[1]
    assert D == H, "alpha path requires input_size == hidden_size"
    assert c_words.shape[0] == T and c_words.shape[2] == H

    Dp = _round_up(D, 128)
    Hp = _round_up(H, 128)
    C_max = _round_up(max(c_words.shape[1], 1), 8)    # static, multiple of 8 sublanes

    w_ih, w_hh, b, aw_ih, aw_hh, ab = _prepare_padded_params(params, H, Dp, Hp)

    xs_p = jnp.pad(xs, ((0, 0), (0, Dp - D))).reshape(T, 1, Dp)
    cw_p = jnp.pad(c_words, ((0, 0), (0, C_max - c_words.shape[1]), (0, Hp - H)))
    h0_p = jnp.pad(h0, ((0, 0), (0, Hp - H)))
    c0_p = jnp.pad(c0, ((0, 0), (0, Hp - H)))
    counts = jnp.asarray(c_counts, dtype=jnp.int32)

    grid_spec = pltpu.PrefetchScalarGridSpec(
        num_scalar_prefetch=1,                        # c_counts -> SMEM
        grid=(T,),
        in_specs=[
            pl.BlockSpec((1, 1, Dp), lambda t, cn: (t, 0, 0)),        # x_t
            pl.BlockSpec((1, Hp), lambda t, cn: (0, 0)),              # h0 (const)
            pl.BlockSpec((1, Hp), lambda t, cn: (0, 0)),              # c0 (const)
            pl.BlockSpec((1, C_max, Hp), lambda t, cn: (t, 0, 0)),    # word cells
            pl.BlockSpec((Dp, 3 * Hp), lambda t, cn: (0, 0)),         # W_ih (resident)
            pl.BlockSpec((Hp, 3 * Hp), lambda t, cn: (0, 0)),         # W_hh (resident)
            pl.BlockSpec((1, 3 * Hp), lambda t, cn: (0, 0)),          # bias
            pl.BlockSpec((Dp, Hp), lambda t, cn: (0, 0)),             # alpha W_ih
            pl.BlockSpec((Hp, Hp), lambda t, cn: (0, 0)),             # alpha W_hh
            pl.BlockSpec((1, Hp), lambda t, cn: (0, 0)),              # alpha bias
        ],
        out_specs=(
            pl.BlockSpec((1, 1, Hp), lambda t, cn: (t, 0, 0)),        # h per step
            pl.BlockSpec((1, 1, Hp), lambda t, cn: (t, 0, 0)),        # c per step
        ),
        scratch_shapes=[pltpu.VMEM((1, Hp), jnp.float32),             # h carry
                        pltpu.VMEM((1, Hp), jnp.float32)],            # c carry
    )

    hs_p, cs_p = pl.pallas_call(
        _fused_lattice_lstm_kernel,
        out_shape=(jax.ShapeDtypeStruct((T, 1, Hp), jnp.float32),
                   jax.ShapeDtypeStruct((T, 1, Hp), jnp.float32)),
        grid_spec=grid_spec,
        compiler_params=pltpu.CompilerParams(
            # recurrent carry in scratch -> the time axis must stay sequential
            dimension_semantics=("arbitrary",)),
    )(counts, xs_p, h0_p, c0_p, cw_p, w_ih, w_hh, b, aw_ih, aw_hh, ab)

    return hs_p[:, 0, :H], cs_p[:, 0, :H]


# ----------------------------------------------------------------------------
# Module-equivalent single-step forward (same signature as the PyTorch cell)
# ----------------------------------------------------------------------------
def multi_input_lstm_cell(params, input_, c_input, hx):
    h0, c0 = hx
    assert h0.shape[0] == 1
    H = h0.shape[1]
    C = len(c_input)
    if C > 0:
        c_words = jnp.concatenate(c_input, axis=0)[None, :, :]   # (1, C, H)
    else:
        c_words = jnp.zeros((1, 1, H), jnp.float32)              # dummy (masked)
    counts = jnp.array([C], jnp.int32)
    hs, cs = lattice_lstm_sweep(params, input_, c_words, counts, hx)
    return hs[0:1], cs[0:1]


# ----------------------------------------------------------------------------
# Deterministic parameter init (mirrors reset_parameters)
# ----------------------------------------------------------------------------
def init_params(input_size, hidden_size, seed=0):
    rng = np.random.RandomState(seed)

    def orthogonal(shape):
        rows, cols = shape
        a = rng.normal(size=(max(rows, cols), min(rows, cols))).astype(np.float32)
        q, _ = np.linalg.qr(a)
        q = q[:rows, :cols] if rows >= cols else q[:cols, :rows].T
        return jnp.asarray(q, dtype=jnp.float32)

    eye = jnp.eye(hidden_size, dtype=jnp.float32)
    return {
        "weight_ih": orthogonal((input_size, 3 * hidden_size)),
        "weight_hh": jnp.tile(eye, (1, 3)),            # eye(H).repeat(1, 3)
        "alpha_weight_ih": orthogonal((hidden_size, hidden_size)),
        "alpha_weight_hh": eye,                        # eye(H).repeat(1, 1)
        "bias": jnp.zeros((3 * hidden_size,), jnp.float32),
        "alpha_bias": jnp.zeros((hidden_size,), jnp.float32),
    }


# ----------------------------------------------------------------------------
# Pure-JAX reference (same math, no Pallas)
# ----------------------------------------------------------------------------
def reference_cell(params, x, c_list, h0, c0):
    H = h0.shape[1]
    gates = (h0 @ params["weight_hh"] + params["bias"][None, :]
             + x @ params["weight_ih"])
    i = jax.nn.sigmoid(gates[:, :H])
    o = jax.nn.sigmoid(gates[:, H:2 * H])
    g = jnp.tanh(gates[:, 2 * H:])
    if len(c_list) == 0:
        c1 = (1.0 - i) * c0 + i * g
    else:
        c_in = jnp.concatenate(c_list, axis=0)
        alpha = jax.nn.sigmoid(x @ params["alpha_weight_ih"]
                               + params["alpha_bias"][None, :]
                               + c_in @ params["alpha_weight_hh"])
        a = jnp.exp(jnp.concatenate([i, alpha], axis=0))
        a = a / a.sum(axis=0, keepdims=True)
        merge = jnp.concatenate([g, c_in], axis=0)
        c1 = (merge * a).sum(axis=0, keepdims=True)
    h1 = o * jnp.tanh(c1)
    return h1, c1


def reference_sweep(params, xs, c_words, c_counts, h0, c0):
    T = xs.shape[0]
    h, c = h0, c0
    hs, cs = [], []
    for t in range(T):
        cn = int(c_counts[t])
        c_list = [c_words[t, j:j + 1] for j in range(cn)]
        h, c = reference_cell(params, xs[t:t + 1], c_list, h, c)
        hs.append(h)
        cs.append(c)
    return jnp.concatenate(hs, 0), jnp.concatenate(cs, 0)


# ----------------------------------------------------------------------------
if __name__ == "__main__":
    # alpha path requires input_size == hidden_size (see module spec)
    input_size = 32
    hidden_size = 32
    T = 8           # timesteps fused into one pallas_call
    C_MAX = 8       # static max word-cells per step (padded, masked in-kernel)

    params = init_params(input_size, hidden_size, seed=0)

    key = jax.random.PRNGKey(0)
    kx, kh, kc, kw = jax.random.split(key, 4)
    xs = jax.random.normal(kx, (T, input_size), dtype=jnp.float32)
    h_0 = jax.random.normal(kh, (1, hidden_size), dtype=jnp.float32)
    c_0 = jax.random.normal(kc, (1, hidden_size), dtype=jnp.float32)
    c_words = jax.random.normal(kw, (T, C_MAX, hidden_size), dtype=jnp.float32)
    c_counts = np.array([0, 2, 5, 0, 1, 8, 3, 0], dtype=np.int32)  # mix of paths

    # --- fused whole-sequence sweep (one pallas_call for all T steps) ---
    hs, cs = lattice_lstm_sweep(params, xs, c_words, jnp.asarray(c_counts),
                                (h_0, c_0))
    jax.block_until_ready((hs, cs))
    hs_ref, cs_ref = reference_sweep(params, xs, c_words, c_counts, h_0, c_0)
    # tolerance relaxed because pl.reciprocal(approx=True) is used in-kernel
    assert np.allclose(np.asarray(hs), np.asarray(hs_ref), atol=2e-3, rtol=2e-3)
    assert np.allclose(np.asarray(cs), np.asarray(cs_ref), atol=2e-3, rtol=2e-3)

    # --- module-equivalent single-step API: word-lattice path (c_num > 0) ---
    c_input = [c_words[1, j:j + 1] for j in range(3)]
    h1, c1 = multi_input_lstm_cell(params, xs[0:1], c_input, (h_0, c_0))
    jax.block_until_ready((h1, c1))
    h1_ref, c1_ref = reference_cell(params, xs[0:1], c_input, h_0, c_0)
    assert np.allclose(np.asarray(h1), np.asarray(h1_ref), atol=2e-3, rtol=2e-3)
    assert np.allclose(np.asarray(c1), np.asarray(c1_ref), atol=2e-3, rtol=2e-3)

    # --- module-equivalent single-step API: no-word path (c_num == 0) ---
    h1b, c1b = multi_input_lstm_cell(params, xs[0:1], [], (h_0, c_0))
    jax.block_until_ready((h1b, c1b))
    h1b_ref, c1b_ref = reference_cell(params, xs[0:1], [], h_0, c_0)
    assert np.allclose(np.asarray(h1b), np.asarray(h1b_ref), atol=1e-4)
    assert np.allclose(np.asarray(c1b), np.asarray(c1b_ref), atol=1e-4)

    print("KERNEL_OK")
</pallas_src>

<mosaic_0001>
module attributes {stable_mosaic.version = 11 : i64} {
  func.func @_fused_lattice_lstm_kernel(%arg0: i32, %arg1: memref<8xi32, #tpu.memory_space<smem>>, %arg2: memref<1x1x128xf32, #tpu.memory_space<vmem>>, %arg3: memref<1x128xf32, #tpu.memory_space<vmem>>, %arg4: memref<1x128xf32, #tpu.memory_space<vmem>>, %arg5: memref<1x8x128xf32, #tpu.memory_space<vmem>>, %arg6: memref<128x384xf32, #tpu.memory_space<vmem>>, %arg7: memref<128x384xf32, #tpu.memory_space<vmem>>, %arg8: memref<1x384xf32, #tpu.memory_space<vmem>>, %arg9: memref<128x128xf32, #tpu.memory_space<vmem>>, %arg10: memref<128x128xf32, #tpu.memory_space<vmem>>, %arg11: memref<1x128xf32, #tpu.memory_space<vmem>>, %arg12: memref<1x1x128xf32, #tpu.memory_space<vmem>>, %arg13: memref<1x1x128xf32, #tpu.memory_space<vmem>>, %arg14: memref<1x128xf32, #tpu.memory_space<vmem>>, %arg15: memref<1x128xf32, #tpu.memory_space<vmem>>) attributes {dimension_semantics = [#tpu.dimension_semantics<arbitrary>], iteration_bounds = array<i64: 8>, scalar_prefetch = 1 : i64, scratch_operands = 2 : i64, tpu.core_type = #tpu.core_type<tc>, window_params = [{transform_indices = @transform_0, window_bounds = array<i64: 1, 1, 128>}, {pipeline_mode = #tpu.pipeline_mode<synchronous>, transform_indices = @transform_1, window_bounds = array<i64: 1, 128>}, {pipeline_mode = #tpu.pipeline_mode<synchronous>, transform_indices = @transform_2, window_bounds = array<i64: 1, 128>}, {transform_indices = @transform_3, window_bounds = array<i64: 1, 8, 128>}, {pipeline_mode = #tpu.pipeline_mode<synchronous>, transform_indices = @transform_4, window_bounds = array<i64: 128, 384>}, {pipeline_mode = #tpu.pipeline_mode<synchronous>, transform_indices = @transform_5, window_bounds = array<i64: 128, 384>}, {pipeline_mode = #tpu.pipeline_mode<synchronous>, transform_indices = @transform_6, window_bounds = array<i64: 1, 384>}, {pipeline_mode = #tpu.pipeline_mode<synchronous>, transform_indices = @transform_7, window_bounds = array<i64: 128, 128>}, {pipeline_mode = #tpu.pipeline_mode<synchronous>, transform_indices = @transform_8, window_bounds = array<i64: 128, 128>}, {pipeline_mode = #tpu.pipeline_mode<synchronous>, transform_indices = @transform_9, window_bounds = array<i64: 1, 128>}, {transform_indices = @transform_10, window_bounds = array<i64: 1, 1, 128>}, {transform_indices = @transform_11, window_bounds = array<i64: 1, 1, 128>}]} {
    %c0_i32 = arith.constant 0 : i32
    %0 = arith.cmpi eq, %arg0, %c0_i32 : i32
    %1 = arith.extui %0 : i1 to i32
    %c0_i32_0 = arith.constant 0 : i32
    %2 = arith.cmpi ne, %1, %c0_i32_0 : i32
    scf.if %2 {
      %c0_28 = arith.constant 0 : index
      %c0_29 = arith.constant 0 : index
      %45 = vector.load %arg3[%c0_28, %c0_29] : memref<1x128xf32, #tpu.memory_space<vmem>>, vector<1x128xf32>
      %c0_30 = arith.constant 0 : index
      %c0_31 = arith.constant 0 : index
      %46 = vector.load %arg14[%c0_30, %c0_31] : memref<1x128xf32, #tpu.memory_space<vmem>>, vector<1x128xf32>
      tpu.vector_store %arg14[%c0_30, %c0_31], %45 {strides = array<i32>} : memref<1x128xf32, #tpu.memory_space<vmem>>, vector<1x128xf32>,
      %c0_32 = arith.constant 0 : index
      %c0_33 = arith.constant 0 : index
      %47 = vector.load %arg4[%c0_32, %c0_33] : memref<1x128xf32, #tpu.memory_space<vmem>>, vector<1x128xf32>
      %c0_34 = arith.constant 0 : index
      %c0_35 = arith.constant 0 : index
      %48 = vector.load %arg15[%c0_34, %c0_35] : memref<1x128xf32, #tpu.memory_space<vmem>>, vector<1x128xf32>
      tpu.vector_store %arg15[%c0_34, %c0_35], %47 {strides = array<i32>} : memref<1x128xf32, #tpu.memory_space<vmem>>, vector<1x128xf32>,
    } else {
    }
    %c0 = arith.constant 0 : index
    %c0_1 = arith.constant 0 : index
    %c0_2 = arith.constant 0 : index
    %3 = vector.load %arg2[%c0, %c0_1, %c0_2] : memref<1x1x128xf32, #tpu.memory_space<vmem>>, vector<1x1x128xf32>
    %4 = vector.shape_cast %3 : vector<1x1x128xf32> to vector<1x128xf32>
    %c0_3 = arith.constant 0 : index
    %c0_4 = arith.constant 0 : index
    %5 = vector.load %arg14[%c0_3, %c0_4] : memref<1x128xf32, #tpu.memory_space<vmem>>, vector<1x128xf32>
    %c0_5 = arith.constant 0 : index
    %c0_6 = arith.constant 0 : index
    %6 = vector.load %arg6[%c0_5, %c0_6] : memref<128x384xf32, #tpu.memory_space<vmem>>, vector<128x384xf32>
    %cst = arith.constant dense<0.000000e+00> : vector<1x384xf32>
    %7 = tpu.matmul %4, %6, %cst {dimension_numbers = #tpu.dot_dimension_numbers<[1], [0], [0], [1], [0, 0, 1, 1], [], []>} : vector<1x128xf32>, vector<128x384xf32>, vector<1x384xf32> -> vector<1x384xf32>
    %c0_7 = arith.constant 0 : index
    %c0_8 = arith.constant 0 : index
    %8 = vector.load %arg7[%c0_7, %c0_8] : memref<128x384xf32, #tpu.memory_space<vmem>>, vector<128x384xf32>
    %cst_9 = arith.constant dense<0.000000e+00> : vector<1x384xf32>
    %9 = tpu.matmul %5, %8, %cst_9 {dimension_numbers = #tpu.dot_dimension_numbers<[1], [0], [0], [1], [0, 0, 1, 1], [], []>} : vector<1x128xf32>, vector<128x384xf32>, vector<1x384xf32> -> vector<1x384xf32>
    %10 = arith.addf %7, %9 : vector<1x384xf32>
    %c0_10 = arith.constant 0 : index
    %c0_11 = arith.constant 0 : index
    %11 = vector.load %arg8[%c0_10, %c0_11] : memref<1x384xf32, #tpu.memory_space<vmem>>, vector<1x384xf32>
    %12 = arith.addf %10, %11 : vector<1x384xf32>
    %13 = vector.extract_strided_slice %12 {offsets = [0, 0], sizes = [1, 128], strides = [1, 1]} : vector<1x384xf32> to vector<1x128xf32>
    %14 = arith.negf %13 : vector<1x128xf32>
    %15 = math.exp %14 : vector<1x128xf32>
    %cst_12 = arith.constant 1.000000e+00 : f32
    %16 = vector.broadcast %cst_12 : f32 to vector<1x128xf32>
    %17 = arith.addf %16, %15 : vector<1x128xf32>
    %18 = arith.divf %16, %17 : vector<1x128xf32>
    %19 = vector.extract_strided_slice %12 {offsets = [0, 128], sizes = [1, 128], strides = [1, 1]} : vector<1x384xf32> to vector<1x128xf32>
    %20 = arith.negf %19 : vector<1x128xf32>
    %21 = math.exp %20 : vector<1x128xf32>
    %cst_13 = arith.constant 1.000000e+00 : f32
    %22 = vector.broadcast %cst_13 : f32 to vector<1x128xf32>
    %23 = arith.addf %22, %21 : vector<1x128xf32>
    %24 = arith.divf %22, %23 : vector<1x128xf32>
    %25 = vector.extract_strided_slice %12 {offsets = [0, 256], sizes = [1, 128], strides = [1, 1]} : vector<1x384xf32> to vector<1x128xf32>
    %26 = math.tanh %25 : vector<1x128xf32>
    %27 = arith.index_cast %arg0 : i32 to index
    %28 = memref.load %arg1[%27] : memref<8xi32, #tpu.memory_space<smem>>
    %c0_i32_14 = arith.constant 0 : i32
    %29 = arith.cmpi eq, %28, %c0_i32_14 : i32
    %30 = arith.extui %29 : i1 to i32
    %c0_i32_15 = arith.constant 0 : i32
    %31 = arith.cmpi ne, %30, %c0_i32_15 : i32
    scf.if %31 {
      %cst_28 = arith.constant 1.000000e+00 : f32
      %45 = vector.broadcast %cst_28 : f32 to vector<1x128xf32>
      %46 = arith.subf %45, %18 : vector<1x128xf32>
      %c0_29 = arith.constant 0 : index
      %c0_30 = arith.constant 0 : index
      %47 = vector.load %arg15[%c0_29, %c0_30] : memref<1x128xf32, #tpu.memory_space<vmem>>, vector<1x128xf32>
      %48 = arith.mulf %46, %47 : vector<1x128xf32>
      %49 = arith.mulf %18, %26 : vector<1x128xf32>
      %50 = arith.addf %48, %49 : vector<1x128xf32>
      %c0_31 = arith.constant 0 : index
      %c0_32 = arith.constant 0 : index
      %51 = vector.load %arg15[%c0_31, %c0_32] : memref<1x128xf32, #tpu.memory_space<vmem>>, vector<1x128xf32>
      tpu.vector_store %arg15[%c0_31, %c0_32], %50 {strides = array<i32>} : memref<1x128xf32, #tpu.memory_space<vmem>>, vector<1x128xf32>,
    } else {
    }
    %c0_i32_16 = arith.constant 0 : i32
    %32 = arith.cmpi sgt, %28, %c0_i32_16 : i32
    %33 = arith.extui %32 : i1 to i32
    %c0_i32_17 = arith.constant 0 : i32
    %34 = arith.cmpi ne, %33, %c0_i32_17 : i32
    scf.if %34 {
      %c0_28 = arith.constant 0 : index
      %c0_29 = arith.constant 0 : index
      %c0_30 = arith.constant 0 : index
      %45 = vector.load %arg5[%c0_28, %c0_29, %c0_30] : memref<1x8x128xf32, #tpu.memory_space<vmem>>, vector<1x8x128xf32>
      %46 = vector.shape_cast %45 : vector<1x8x128xf32> to vector<8x128xf32>
      %c0_31 = arith.constant 0 : index
      %c0_32 = arith.constant 0 : index
      %47 = vector.load %arg9[%c0_31, %c0_32] : memref<128x128xf32, #tpu.memory_space<vmem>>, vector<128x128xf32>
      %cst_33 = arith.constant dense<0.000000e+00> : vector<1x128xf32>
      %48 = tpu.matmul %4, %47, %cst_33 {dimension_numbers = #tpu.dot_dimension_numbers<[1], [0], [0], [1], [0, 0, 1, 1], [], []>} : vector<1x128xf32>, vector<128x128xf32>, vector<1x128xf32> -> vector<1x128xf32>
      %c0_34 = arith.constant 0 : index
      %c0_35 = arith.constant 0 : index
      %49 = vector.load %arg11[%c0_34, %c0_35] : memref<1x128xf32, #tpu.memory_space<vmem>>, vector<1x128xf32>
      %50 = arith.addf %48, %49 : vector<1x128xf32>
      %c0_36 = arith.constant 0 : index
      %c0_37 = arith.constant 0 : index
      %51 = vector.load %arg10[%c0_36, %c0_37] : memref<128x128xf32, #tpu.memory_space<vmem>>, vector<128x128xf32>
      %cst_38 = arith.constant dense<0.000000e+00> : vector<8x128xf32>
      %52 = tpu.matmul %46, %51, %cst_38 {dimension_numbers = #tpu.dot_dimension_numbers<[1], [0], [0], [1], [0, 0, 1, 1], [], []>} : vector<8x128xf32>, vector<128x128xf32>, vector<8x128xf32> -> vector<8x128xf32>
      %53 = vector.broadcast %50 : vector<1x128xf32> to vector<8x128xf32>
      %54 = arith.addf %53, %52 : vector<8x128xf32>
      %55 = arith.negf %54 : vector<8x128xf32>
      %56 = math.exp %55 : vector<8x128xf32>
      %cst_39 = arith.constant 1.000000e+00 : f32
      %57 = vector.broadcast %cst_39 : f32 to vector<8x128xf32>
      %58 = arith.addf %57, %56 : vector<8x128xf32>
      %59 = arith.divf %57, %58 : vector<8x128xf32>
      %60 = tpu.iota {dimensions = array<i32: 0>} : vector<8x128xi32>
      %61 = math.exp %18 : vector<1x128xf32>
      %62 = vector.broadcast %28 : i32 to vector<8x128xi32>
      %63 = arith.cmpi slt, %60, %62 : vector<8x128xi32>
      %64 = math.exp %59 : vector<8x128xf32>
      %cst_40 = arith.constant 0.000000e+00 : f32
      %65 = vector.broadcast %cst_40 : f32 to vector<8x128xf32>
      %66 = arith.select %63, %64, %65 : vector<8x128xi1>, vector<8x128xf32>
      %cst_41 = arith.constant dense<0.000000e+00> : vector<128xf32>
      %67 = vector.multi_reduction <add>, %66, %cst_41 [0] : vector<8x128xf32> to vector<128xf32>
      %68 = vector.shape_cast %67 : vector<128xf32> to vector<1x128xf32>
      %69 = arith.addf %61, %68 : vector<1x128xf32>
      %70 = tpu.reciprocal %69 {approx = true} : vector<1x128xf32> -> vector<1x128xf32>
      %71 = arith.mulf %61, %26 : vector<1x128xf32>
      %72 = arith.mulf %66, %46 : vector<8x128xf32>
      %cst_42 = arith.constant dense<0.000000e+00> : vector<128xf32>
      %73 = vector.multi_reduction <add>, %72, %cst_42 [0] : vector<8x128xf32> to vector<128xf32>
      %74 = vector.shape_cast %73 : vector<128xf32> to vector<1x128xf32>
      %75 = arith.addf %71, %74 : vector<1x128xf32>
      %76 = arith.mulf %75, %70 : vector<1x128xf32>
      %c0_43 = arith.constant 0 : index
      %c0_44 = arith.constant 0 : index
      %77 = vector.load %arg15[%c0_43, %c0_44] : memref<1x128xf32, #tpu.memory_space<vmem>>, vector<1x128xf32>
      tpu.vector_store %arg15[%c0_43, %c0_44], %76 {strides = array<i32>} : memref<1x128xf32, #tpu.memory_space<vmem>>, vector<1x128xf32>,
    } else {
    }
    %c0_18 = arith.constant 0 : index
    %c0_19 = arith.constant 0 : index
    %35 = vector.load %arg15[%c0_18, %c0_19] : memref<1x128xf32, #tpu.memory_space<vmem>>, vector<1x128xf32>
    %36 = math.tanh %35 : vector<1x128xf32>
    %37 = arith.mulf %24, %36 : vector<1x128xf32>
    %c0_20 = arith.constant 0 : index
    %c0_21 = arith.constant 0 : index
    %38 = vector.load %arg14[%c0_20, %c0_21] : memref<1x128xf32, #tpu.memory_space<vmem>>, vector<1x128xf32>
    tpu.vector_store %arg14[%c0_20, %c0_21], %37 {strides = array<i32>} : memref<1x128xf32, #tpu.memory_space<vmem>>, vector<1x128xf32>,
    %c0_22 = arith.constant 0 : index
    %c0_23 = arith.constant 0 : index
    %c0_24 = arith.constant 0 : index
    %39 = vector.load %arg12[%c0_22, %c0_23, %c0_24] : memref<1x1x128xf32, #tpu.memory_space<vmem>>, vector<1x1x128xf32>
    %40 = vector.shape_cast %39 : vector<1x1x128xf32> to vector<1x128xf32>
    %41 = vector.shape_cast %37 : vector<1x128xf32> to vector<1x1x128xf32>
    tpu.vector_store %arg12[%c0_22, %c0_23, %c0_24], %41 {strides = array<i32>} : memref<1x1x128xf32, #tpu.memory_space<vmem>>, vector<1x1x128xf32>,
    %c0_25 = arith.constant 0 : index
    %c0_26 = arith.constant 0 : index
    %c0_27 = arith.constant 0 : index
    %42 = vector.load %arg13[%c0_25, %c0_26, %c0_27] : memref<1x1x128xf32, #tpu.memory_space<vmem>>, vector<1x1x128xf32>
    %43 = vector.shape_cast %42 : vector<1x1x128xf32> to vector<1x128xf32>
    %44 = vector.shape_cast %35 : vector<1x128xf32> to vector<1x1x128xf32>
    tpu.vector_store %arg13[%c0_25, %c0_26, %c0_27], %44 {strides = array<i32>} : memref<1x1x128xf32, #tpu.memory_space<vmem>>, vector<1x1x128xf32>,
    return
  }
  func.func @transform_0(%arg0: i32, %arg1: memref<8xi32, #tpu.memory_space<smem>>) -> (i32, i32, i32) {
    %c0_i32 = arith.constant 0 : i32
    %c0_i32_0 = arith.constant 0 : i32
    %c0_i32_1 = arith.constant 0 : i32
    return %arg0, %c0_i32, %c0_i32_0 : i32, i32, i32
  }
  func.func @transform_1(%arg0: i32, %arg1: memref<8xi32, #tpu.memory_space<smem>>) -> (i32, i32) {
    %c0_i32 = arith.constant 0 : i32
    %c0_i32_0 = arith.constant 0 : i32
    %c0_i32_1 = arith.constant 0 : i32
    return %c0_i32, %c0_i32_0 : i32, i32
  }
  func.func @transform_2(%arg0: i32, %arg1: memref<8xi32, #tpu.memory_space<smem>>) -> (i32, i32) {
    %c0_i32 = arith.constant 0 : i32
    %c0_i32_0 = arith.constant 0 : i32
    %c0_i32_1 = arith.constant 0 : i32
    return %c0_i32, %c0_i32_0 : i32, i32
  }
  func.func @transform_3(%arg0: i32, %arg1: memref<8xi32, #tpu.memory_space<smem>>) -> (i32, i32, i32) {
    %c0_i32 = arith.constant 0 : i32
    %c0_i32_0 = arith.constant 0 : i32
    %c0_i32_1 = arith.constant 0 : i32
    return %arg0, %c0_i32, %c0_i32_0 : i32, i32, i32
  }
  func.func @transform_4(%arg0: i32, %arg1: memref<8xi32, #tpu.memory_space<smem>>) -> (i32, i32) {
    %c0_i32 = arith.constant 0 : i32
    %c0_i32_0 = arith.constant 0 : i32
    %c0_i32_1 = arith.constant 0 : i32
    return %c0_i32, %c0_i32_0 : i32, i32
  }
  func.func @transform_5(%arg0: i32, %arg1: memref<8xi32, #tpu.memory_space<smem>>) -> (i32, i32) {
    %c0_i32 = arith.constant 0 : i32
    %c0_i32_0 = arith.constant 0 : i32
    %c0_i32_1 = arith.constant 0 : i32
    return %c0_i32, %c0_i32_0 : i32, i32
  }
  func.func @transform_6(%arg0: i32, %arg1: memref<8xi32, #tpu.memory_space<smem>>) -> (i32, i32) {
    %c0_i32 = arith.constant 0 : i32
    %c0_i32_0 = arith.constant 0 : i32
    %c0_i32_1 = arith.constant 0 : i32
    return %c0_i32, %c0_i32_0 : i32, i32
  }
  func.func @transform_7(%arg0: i32, %arg1: memref<8xi32, #tpu.memory_space<smem>>) -> (i32, i32) {
    %c0_i32 = arith.constant 0 : i32
    %c0_i32_0 = arith.constant 0 : i32
    %c0_i32_1 = arith.constant 0 : i32
    return %c0_i32, %c0_i32_0 : i32, i32
  }
  func.func @transform_8(%arg0: i32, %arg1: memref<8xi32, #tpu.memory_space<smem>>) -> (i32, i32) {
    %c0_i32 = arith.constant 0 : i32
    %c0_i32_0 = arith.constant 0 : i32
    %c0_i32_1 = arith.constant 0 : i32
    return %c0_i32, %c0_i32_0 : i32, i32
  }
  func.func @transform_9(%arg0: i32, %arg1: memref<8xi32, #tpu.memory_space<smem>>) -> (i32, i32) {
    %c0_i32 = arith.constant 0 : i32
    %c0_i32_0 = arith.constant 0 : i32
    %c0_i32_1 = arith.constant 0 : i32
    return %c0_i32, %c0_i32_0 : i32, i32
  }
  func.func @transform_10(%arg0: i32, %arg1: memref<8xi32, #tpu.memory_space<smem>>) -> (i32, i32, i32) {
    %c0_i32 = arith.constant 0 : i32
    %c0_i32_0 = arith.constant 0 : i32
    %c0_i32_1 = arith.constant 0 : i32
    return %arg0, %c0_i32, %c0_i32_0 : i32, i32, i32
  }
  func.func @transform_11(%arg0: i32, %arg1: memref<8xi32, #tpu.memory_space<smem>>) -> (i32, i32, i32) {
    %c0_i32 = arith.constant 0 : i32
    %c0_i32_0 = arith.constant 0 : i32
    %c0_i32_1 = arith.constant 0 : i32
    return %arg0, %c0_i32, %c0_i32_0 : i32, i32, i32
  }
}

</mosaic_0001>

<llo_original>
// kernel: tpu_custom_call.1
$region0: #{tpu_custom_call.1}
  #allocation0 [shape = 'u32[]', space=smem, size = 0x4, offset = 0x4, fixed_abs, tag = 'smem constant byte address 0x4 - core index']
  #allocation1 [shape = 'u32[144,128]{1,0:T(1,128)}', space=vmem, size = 0x12000, scoped, tag = 'internal scratch']
  #allocation2 [shape = 'f32[1,128]{1,0:T(1,128)}', space=vmem, size = 0x200, scoped, tag = 'scratch operand']
  #allocation3 [shape = 'f32[1,128]{1,0:T(1,128)}', space=vmem, size = 0x200, scoped, tag = 'scratch operand']
  #allocation4 [shape = 's32[1]{0}', space=sflag, size = 0x4, scoped, tag = 'scoped memory for tpu_custom_call.1']
  #allocation5 [shape = 'u8[512]{0}', space=smem, size = 0x200, scoped, tag = 'prefetched SMEM operand 0']
  %s0 = inlined_call_operand.hbm [shape: s32[8], index: 0, kind: input, shape index: {}]
  %s1 = inlined_call_operand.hbm [shape: f32[8,1,128], index: 1, kind: input, shape index: {}]
  %s2 = inlined_call_operand.vmem [shape: f32[1,128], index: 2, kind: input, shape index: {}]
  %s3 = inlined_call_operand.vmem [shape: f32[1,128], index: 3, kind: input, shape index: {}]
  %s4 = inlined_call_operand.hbm [shape: f32[8,8,128], index: 4, kind: input, shape index: {}]
  %s5 = inlined_call_operand.hbm [shape: f32[128,384], index: 5, kind: input, shape index: {}]
  %s6 = inlined_call_operand.hbm [shape: f32[128,384], index: 6, kind: input, shape index: {}]
  %s7 = inlined_call_operand.vmem [shape: f32[1,384], index: 7, kind: input, shape index: {}]
  %s8 = inlined_call_operand.hbm [shape: f32[128,128], index: 8, kind: input, shape index: {}]
  %s9 = inlined_call_operand.hbm [shape: f32[128,128], index: 9, kind: input, shape index: {}]
  %s10 = inlined_call_operand.vmem [shape: f32[1,128], index: 10, kind: input, shape index: {}]
  %s11 = inlined_call_operand.hbm [shape: f32[8,1,128], index: 11, kind: output, shape index: {0}]
  %s12 = inlined_call_operand.hbm [shape: f32[8,1,128], index: 12, kind: output, shape index: {1}]
  %13 = xla_tuple %s11, %s12
  %s14 = sld [smem:[#allocation0]]
  $region117: #{tpu_custom_call.1} parent=0
    _
  %s16 = ssub.s32 1, %s14
  %s17 = scalar_select 0, %s16, %s14
  %19 = dma.hbm_to_smem %s0, 16, [#allocation5], [#allocation4]
  %20 = dma.done [#allocation4], 16
  %21 = sfence
  $region1: #{tpu_custom_call.1} parent=0
    #allocation6 [shape = 'u8[1024]{0}', space=vmem, size = 0x400, scoped, tag = 'input window, operand 1']
    #allocation7 [shape = 's32[2]{0}', space=sflag, size = 0x8, scoped, tag = 'scoped memory for tpu_custom_call.1']
    #allocation8 [shape = 's32[2]{0}', space=sflag, size = 0x8, scoped, tag = 'scoped memory for tpu_custom_call.1']
    #allocation9 [shape = 'u8[8192]{0}', space=vmem, size = 0x2000, scoped, tag = 'input window, operand 4']
    #allocation10 [shape = 's32[2]{0}', space=sflag, size = 0x8, scoped, tag = 'scoped memory for tpu_custom_call.1']
    #allocation11 [shape = 'u8[196608]{0}', space=vmem, size = 0x30000, scoped, tag = 'input window, operand 5, single buffered']
    #allocation12 [shape = 'u8[196608]{0}', space=vmem, size = 0x30000, scoped, tag = 'input window, operand 6, single buffered']
    #allocation13 [shape = 's32[1]{0}', space=sflag, size = 0x4, scoped, tag = 'scoped memory for tpu_custom_call.1']
    #allocation14 [shape = 'u8[65536]{0}', space=vmem, size = 0x10000, scoped, tag = 'input window, operand 8, single buffered']
    #allocation15 [shape = 'u8[65536]{0}', space=vmem, size = 0x10000, scoped, tag = 'input window, operand 9, single buffered']
    #allocation16 [shape = 's32[1]{0}', space=sflag, size = 0x4, scoped, tag = 'scoped memory for tpu_custom_call.1']
    #allocation17 [shape = 'u8[1024]{0}', space=vmem, size = 0x400, scoped, tag = 'output window, operand 0']
    #allocation18 [shape = 'u8[1024]{0}', space=vmem, size = 0x400, scoped, tag = 'output window, operand 1']
    #allocation19 [shape = 's32[2]{0}', space=sflag, size = 0x8, scoped, tag = 'scoped memory for tpu_custom_call.1']
    %22 = vsyncpa [#allocation7], 0
    %s23 = scalar_lea.sflag [#allocation7], 1
    %24 = vsyncpa %s23, 0
    %25 = vsyncpa [#allocation10], 0
    %s26 = scalar_lea.sflag [#allocation10], 1
    %27 = vsyncpa %s26, 0
    %28 = vsyncpa [#allocation13], 0
    %29 = vsyncpa [#allocation16], 0
    %30 = vsyncpa [#allocation8], 0
    %s31 = scalar_lea.sflag [#allocation8], 1
    %32 = vsyncpa %s31, 0
    %33 = vsyncpa [#allocation19], 0
    %s34 = scalar_lea.sflag [#allocation19], 1
    %35 = vsyncpa %s34, 0
    loop: start=0, step=1, limit=10
    $region2: #{tpu_custom_call.1} parent=1 // loop_pre_header
      _
    $region3: #{tpu_custom_call.1} parent=1 // loop_header
      %s37 = sphi 0, %s41
      %p38 = scmp.ge.s32.totalorder %s37, 10
      %s47 = sphi 0, %s49
      %s50 = sphi 0, %s47
      %s51 = sphi 0, %s50
      %s67 = sphi 0, %s51
      %s71 = sphi 0, %s71
      %s73 = sphi 0, %s71
      %s74 = sphi 0, %s73
      %s88 = sphi 0, %s74
      %s92 = sphi 0, %s92
      %s94 = sphi 0, %s92
      %s95 = sphi 0, %s94
      %s109 = sphi 0, %s95
      %s115 = sphi 0, %s117
      %s118 = sphi 0, %s115
      %s119 = sphi 0, %s118
      %s135 = sphi 0, %s119
      %s139 = sphi 0, %s139
      %s141 = sphi 0, %s139
      %s142 = sphi 0, %s141
      %s156 = sphi 0, %s142
      %s160 = sphi 0, %s160
      %s162 = sphi 0, %s160
      %s163 = sphi 0, %s162
      %s177 = sphi 0, %s163
      %s181 = sphi 0, %s181
      %s183 = sphi 0, %s181
      %s184 = sphi 0, %s183
      %s198 = sphi 0, %s184
      %s202 = sphi 0, %s202
      %s204 = sphi 0, %s202
      %s205 = sphi 0, %s204
      %s219 = sphi 0, %s205
      %s223 = sphi 0, %s223
      %s225 = sphi 0, %s223
      %s226 = sphi 0, %s225
      %s240 = sphi 0, %s226
      %s244 = sphi 0, %s244
      %s246 = sphi 0, %s244
      %s247 = sphi 0, %s246
      %s261 = sphi 0, %s247
      %s267 = sphi 0, %s269
      %s270 = sphi 0, %s267
      %s271 = sphi 0, %s270
      %s287 = sphi 0, %s271
      %s293 = sphi 0, %s295
      %s296 = sphi 0, %s293
      %s297 = sphi 0, %s296
      %s313 = sphi 0, %s297
    $region4: #{tpu_custom_call.1} parent=1 // loop_header_branch
      %40 = sbr.rel (%p38) target = $region8
    $region5: #{tpu_custom_call.1} parent=1 // loop_body
      %s42 = ssub.s32 %s37, 1
      %s43 = ssub.s32 %s37, 2
      %s44 = sadd.s32 %s37, 1
      %s45 = ssub.s32 %s37, %s44
      %p46 = scmp.eq.s32.totalorder %s45, 0
      %s48 = sadd.s32 %s47, 1
      %s49 = scalar_select %p46, %s47, %s48
      %p52 = pneg %p46
      %p53 = scmp.eq.s32.totalorder %s37, 7
      %p54 = por %p52, %p53
      %p55 = scmp.ne.s32.totalorder %s47, %s50
      %p56 = scmp.eq.s32.totalorder %s37, 0
      %p57 = por %p55, %p56
      %p58 = scmp.ne.s32.totalorder %s47, %s50
      %p59 = scmp.eq.s32.totalorder %s42, 7
      %p60 = por %p58, %p59
      %p61 = scmp.ne.s32.totalorder %s50, %s51
      %p62 = scmp.eq.s32.totalorder %s42, 0
      %p63 = por %p61, %p62
      %p64 = scmp.ne.s32.totalorder %s50, %s51
      %p65 = scmp.eq.s32.totalorder %s43, 7
      %p66 = por %p64, %p65
      %p68 = scmp.ne.s32.totalorder %s51, %s67
      %p69 = scmp.eq.s32.totalorder %s43, 0
      %p70 = por %p68, %p69
      %s72 = sadd.s32 %s71, 1
      %p75 = scmp.eq.s32.totalorder %s37, 7
      %p76 = scmp.ne.s32.totalorder %s71, %s73
      %p77 = scmp.eq.s32.totalorder %s37, 0
      %p78 = por %p76, %p77
      %p79 = scmp.ne.s32.totalorder %s71, %s73
      %p80 = scmp.eq.s32.totalorder %s42, 7
      %p81 = por %p79, %p80
      %p82 = scmp.ne.s32.totalorder %s73, %s74
      %p83 = scmp.eq.s32.totalorder %s42, 0
      %p84 = por %p82, %p83
      %p85 = scmp.ne.s32.totalorder %s73, %s74
      %p86 = scmp.eq.s32.totalorder %s43, 7
      %p87 = por %p85, %p86
      %p89 = scmp.ne.s32.totalorder %s74, %s88
      %p90 = scmp.eq.s32.totalorder %s43, 0
      %p91 = por %p89, %p90
      %s93 = sadd.s32 %s92, 1
      %p96 = scmp.eq.s32.totalorder %s37, 7
      %p97 = scmp.ne.s32.totalorder %s92, %s94
      %p98 = scmp.eq.s32.totalorder %s37, 0
      %p99 = por %p97, %p98
      %p100 = scmp.ne.s32.totalorder %s92, %s94
      %p101 = scmp.eq.s32.totalorder %s42, 7
      %p102 = por %p100, %p101
      %p103 = scmp.ne.s32.totalorder %s94, %s95
      %p104 = scmp.eq.s32.totalorder %s42, 0
      %p105 = por %p103, %p104
      %p106 = scmp.ne.s32.totalorder %s94, %s95
      %p107 = scmp.eq.s32.totalorder %s43, 7
      %p108 = por %p106, %p107
      %p110 = scmp.ne.s32.totalorder %s95, %s109
      %p111 = scmp.eq.s32.totalorder %s43, 0
      %p112 = por %p110, %p111
      %s113 = ssub.s32 %s37, %s44
      %p114 = scmp.eq.s32.totalorder %s113, 0
      %s116 = sadd.s32 %s115, 1
      %s117 = scalar_select %p114, %s115, %s116
      %p120 = pneg %p114
      %p121 = scmp.eq.s32.totalorder %s37, 7
      %p122 = por %p120, %p121
      %p123 = scmp.ne.s32.totalorder %s115, %s118
      %p124 = scmp.eq.s32.totalorder %s37, 0
      %p125 = por %p123, %p124
      %p126 = scmp.ne.s32.totalorder %s115, %s118
      %p127 = scmp.eq.s32.totalorder %s42, 7
      %p128 = por %p126, %p127
      %p129 = scmp.ne.s32.totalorder %s118, %s119
      %p130 = scmp.eq.s32.totalorder %s42, 0
      %p131 = por %p129, %p130
      %p132 = scmp.ne.s32.totalorder %s118, %s119
      %p133 = scmp.eq.s32.totalorder %s43, 7
      %p134 = por %p132, %p133
      %p136 = scmp.ne.s32.totalorder %s119, %s135
      %p137 = scmp.eq.s32.totalorder %s43, 0
      %p138 = por %p136, %p137
      %s140 = sadd.s32 %s139, 1
      %p143 = scmp.eq.s32.totalorder %s37, 7
      %p144 = scmp.ne.s32.totalorder %s139, %s141
      %p145 = scmp.eq.s32.totalorder %s37, 0
      %p146 = por %p144, %p145
      %p147 = scmp.ne.s32.totalorder %s139, %s141
      %p148 = scmp.eq.s32.totalorder %s42, 7
      %p149 = por %p147, %p148
      %p150 = scmp.ne.s32.totalorder %s141, %s142
      %p151 = scmp.eq.s32.totalorder %s42, 0
      %p152 = por %p150, %p151
      %p153 = scmp.ne.s32.totalorder %s141, %s142
      %p154 = scmp.eq.s32.totalorder %s43, 7
      %p155 = por %p153, %p154
      %p157 = scmp.ne.s32.totalorder %s142, %s156
      %p158 = scmp.eq.s32.totalorder %s43, 0
      %p159 = por %p157, %p158
      %s161 = sadd.s32 %s160, 1
      %p164 = scmp.eq.s32.totalorder %s37, 7
      %p165 = scmp.ne.s32.totalorder %s160, %s162
      %p166 = scmp.eq.s32.totalorder %s37, 0
      %p167 = por %p165, %p166
      %p168 = scmp.ne.s32.totalorder %s160, %s162
      %p169 = scmp.eq.s32.totalorder %s42, 7
      %p170 = por %p168, %p169
      %p171 = scmp.ne.s32.totalorder %s162, %s163
      %p172 = scmp.eq.s32.totalorder %s42, 0
      %p173 = por %p171, %p172
      %p174 = scmp.ne.s32.totalorder %s162, %s163
      %p175 = scmp.eq.s32.totalorder %s43, 7
      %p176 = por %p174, %p175
      %p178 = scmp.ne.s32.totalorder %s163, %s177
      %p179 = scmp.eq.s32.totalorder %s43, 0
      %p180 = por %p178, %p179
      %s182 = sadd.s32 %s181, 1
      %p185 = scmp.eq.s32.totalorder %s37, 7
      %p186 = scmp.ne.s32.totalorder %s181, %s183
      %p187 = scmp.eq.s32.totalorder %s37, 0
      %p188 = por %p186, %p187
      %p189 = scmp.ne.s32.totalorder %s181, %s183
      %p190 = scmp.eq.s32.totalorder %s42, 7
      %p191 = por %p189, %p190
      %p192 = scmp.ne.s32.totalorder %s183, %s184
      %p193 = scmp.eq.s32.totalorder %s42, 0
      %p194 = por %p192, %p193
      %p195 = scmp.ne.s32.totalorder %s183, %s184
      %p196 = scmp.eq.s32.totalorder %s43, 7
      %p197 = por %p195, %p196
      %p199 = scmp.ne.s32.totalorder %s184, %s198
      %p200 = scmp.eq.s32.totalorder %s43, 0
      %p201 = por %p199, %p200
      %s203 = sadd.s32 %s202, 1
      %p206 = scmp.eq.s32.totalorder %s37, 7
      %p207 = scmp.ne.s32.totalorder %s202, %s204
      %p208 = scmp.eq.s32.totalorder %s37, 0
      %p209 = por %p207, %p208
      %p210 = scmp.ne.s32.totalorder %s202, %s204
      %p211 = scmp.eq.s32.totalorder %s42, 7
      %p212 = por %p210, %p211
      %p213 = scmp.ne.s32.totalorder %s204, %s205
      %p214 = scmp.eq.s32.totalorder %s42, 0
      %p215 = por %p213, %p214
      %p216 = scmp.ne.s32.totalorder %s204, %s205
      %p217 = scmp.eq.s32.totalorder %s43, 7
      %p218 = por %p216, %p217
      %p220 = scmp.ne.s32.totalorder %s205, %s219
      %p221 = scmp.eq.s32.totalorder %s43, 0
      %p222 = por %p220, %p221
      %s224 = sadd.s32 %s223, 1
      %p227 = scmp.eq.s32.totalorder %s37, 7
      %p228 = scmp.ne.s32.totalorder %s223, %s225
      %p229 = scmp.eq.s32.totalorder %s37, 0
      %p230 = por %p228, %p229
      %p231 = scmp.ne.s32.totalorder %s223, %s225
      %p232 = scmp.eq.s32.totalorder %s42, 7
      %p233 = por %p231, %p232
      %p234 = scmp.ne.s32.totalorder %s225, %s226
      %p235 = scmp.eq.s32.totalorder %s42, 0
      %p236 = por %p234, %p235
      %p237 = scmp.ne.s32.totalorder %s225, %s226
      %p238 = scmp.eq.s32.totalorder %s43, 7
      %p239 = por %p237, %p238
      %p241 = scmp.ne.s32.totalorder %s226, %s240
      %p242 = scmp.eq.s32.totalorder %s43, 0
      %p243 = por %p241, %p242
      %s245 = sadd.s32 %s244, 1
      %p248 = scmp.eq.s32.totalorder %s37, 7
      %p249 = scmp.ne.s32.totalorder %s244, %s246
      %p250 = scmp.eq.s32.totalorder %s37, 0
      %p251 = por %p249, %p250
      %p252 = scmp.ne.s32.totalorder %s244, %s246
      %p253 = scmp.eq.s32.totalorder %s42, 7
      %p254 = por %p252, %p253
      %p255 = scmp.ne.s32.totalorder %s246, %s247
      %p256 = scmp.eq.s32.totalorder %s42, 0
      %p257 = por %p255, %p256
      %p258 = scmp.ne.s32.totalorder %s246, %s247
      %p259 = scmp.eq.s32.totalorder %s43, 7
      %p260 = por %p258, %p259
      %p262 = scmp.ne.s32.totalorder %s247, %s261
      %p263 = scmp.eq.s32.totalorder %s43, 0
      %p264 = por %p262, %p263
      %s265 = ssub.s32 %s37, %s44
      %p266 = scmp.eq.s32.totalorder %s265, 0
      %s268 = sadd.s32 %s267, 1
      %s269 = scalar_select %p266, %s267, %s268
      %p272 = pneg %p266
      %p273 = scmp.eq.s32.totalorder %s37, 7
      %p274 = por %p272, %p273
      %p275 = scmp.ne.s32.totalorder %s267, %s270
      %p276 = scmp.eq.s32.totalorder %s37, 0
      %p277 = por %p275, %p276
      %p278 = scmp.ne.s32.totalorder %s267, %s270
      %p279 = scmp.eq.s32.totalorder %s42, 7
      %p280 = por %p278, %p279
      %p281 = scmp.ne.s32.totalorder %s270, %s271
      %p282 = scmp.eq.s32.totalorder %s42, 0
      %p283 = por %p281, %p282
      %p284 = scmp.ne.s32.totalorder %s270, %s271
      %p285 = scmp.eq.s32.totalorder %s43, 7
      %p286 = por %p284, %p285
      %p288 = scmp.ne.s32.totalorder %s271, %s287
      %p289 = scmp.eq.s32.totalorder %s43, 0
      %p290 = por %p288, %p289
      %s291 = ssub.s32 %s37, %s44
      %p292 = scmp.eq.s32.totalorder %s291, 0
      %s294 = sadd.s32 %s293, 1
      %s295 = scalar_select %p292, %s293, %s294
      %p298 = pneg %p292
      %p299 = scmp.eq.s32.totalorder %s37, 7
      %p300 = por %p298, %p299
      %p301 = scmp.ne.s32.totalorder %s293, %s296
      %p302 = scmp.eq.s32.totalorder %s37, 0
      %p303 = por %p301, %p302
      %p304 = scmp.ne.s32.totalorder %s293, %s296
      %p305 = scmp.eq.s32.totalorder %s42, 7
      %p306 = por %p304, %p305
      %p307 = scmp.ne.s32.totalorder %s296, %s297
      %p308 = scmp.eq.s32.totalorder %s42, 0
      %p309 = por %p307, %p308
      %p310 = scmp.ne.s32.totalorder %s296, %s297
      %p311 = scmp.eq.s32.totalorder %s43, 7
      %p312 = por %p310, %p311
      %p314 = scmp.ne.s32.totalorder %s297, %s313
      %p315 = scmp.eq.s32.totalorder %s43, 0
      %p316 = por %p314, %p315
      %p317 = scmp.le.s32.totalorder 1, %s37
      %p318 = scmp.lt.s32.totalorder %s37, 9
      %p319 = pnand %p317, %p318
      %p320 = pneg %p319
      // Predicated region
      $region9: #{tpu_custom_call.1} parent=5 // pred_check
        _
      $region10: #{tpu_custom_call.1} parent=5 // pred_check_branch
        %322 = sbr.rel (%p319) target = $region12
      $region11: #{tpu_custom_call.1} parent=5 // pred_region
        %s323 = ssub.s32 %s37, 1
        // Predicated region
        $region13: #{tpu_custom_call.1} parent=11 // pred_check
          %p324 = pneg %p84
        $region14: #{tpu_custom_call.1} parent=11 // pred_check_branch
          %326 = sbr.rel (%p324) target = $region16
        $region15: #{tpu_custom_call.1} parent=11 // pred_region
          _
        $region16: #{tpu_custom_call.1} parent=11 // pred_fallthru
          _
        // Predicated region
        $region17: #{tpu_custom_call.1} parent=11 // pred_check
          %p327 = pneg %p105
        $region18: #{tpu_custom_call.1} parent=11 // pred_check_branch
          %329 = sbr.rel (%p327) target = $region20
        $region19: #{tpu_custom_call.1} parent=11 // pred_region
          _
        $region20: #{tpu_custom_call.1} parent=11 // pred_fallthru
          _
        // Predicated region
        $region21: #{tpu_custom_call.1} parent=11 // pred_check
          %p330 = pneg %p152
        $region22: #{tpu_custom_call.1} parent=11 // pred_check_branch
          %332 = sbr.rel (%p330) target = $region24
        $region23: #{tpu_custom_call.1} parent=11 // pred_region
          %s334 = ssub.s32 6144, 6144
          %335 = vsyncadd [#allocation10], %s334
          %s336 = sshll.u32 [#allocation11], 4
          %s337 = int_to_ptr.vmem [resolvable:$true] %s336
          %342 = dma.hbm_to_vmem [thread:$0]  %s5, 6144, %s337, [#allocation10], 384, 384, 24
        $region24: #{tpu_custom_call.1} parent=11 // pred_fallthru
          _
        // Predicated region
        $region25: #{tpu_custom_call.1} parent=11 // pred_check
          %p343 = pneg %p173
        $region26: #{tpu_custom_call.1} parent=11 // pred_check_branch
          %345 = sbr.rel (%p343) target = $region28
        $region27: #{tpu_custom_call.1} parent=11 // pred_region
          %s347 = ssub.s32 6144, 6144
          %348 = vsyncadd [#allocation13], %s347
          %s349 = sshll.u32 [#allocation12], 4
          %s350 = int_to_ptr.vmem [resolvable:$true] %s349
          %355 = dma.hbm_to_vmem [thread:$0]  %s6, 6144, %s350, [#allocation13], 384, 384, 24
        $region28: #{tpu_custom_call.1} parent=11 // pred_fallthru
          _
        // Predicated region
        $region29: #{tpu_custom_call.1} parent=11 // pred_check
          %p356 = pneg %p194
        $region30: #{tpu_custom_call.1} parent=11 // pred_check_branch
          %358 = sbr.rel (%p356) target = $region32
        $region31: #{tpu_custom_call.1} parent=11 // pred_region
          _
        $region32: #{tpu_custom_call.1} parent=11 // pred_fallthru
          _
        // Predicated region
        $region33: #{tpu_custom_call.1} parent=11 // pred_check
          %p359 = pneg %p215
        $region34: #{tpu_custom_call.1} parent=11 // pred_check_branch
          %361 = sbr.rel (%p359) target = $region36
        $region35: #{tpu_custom_call.1} parent=11 // pred_region
          %s363 = ssub.s32 2048, 2048
          %364 = vsyncadd [#allocation13], %s363
          %s365 = sshll.u32 [#allocation14], 4
          %s366 = int_to_ptr.vmem [resolvable:$true] %s365
          %371 = dma.hbm_to_vmem [thread:$0]  %s8, 2048, %s366, [#allocation13], 128, 128, 8
        $region36: #{tpu_custom_call.1} parent=11 // pred_fallthru
          _
        // Predicated region
        $region37: #{tpu_custom_call.1} parent=11 // pred_check
          %p372 = pneg %p236
        $region38: #{tpu_custom_call.1} parent=11 // pred_check_branch
          %374 = sbr.rel (%p372) target = $region40
        $region39: #{tpu_custom_call.1} parent=11 // pred_region
          %s376 = ssub.s32 2048, 2048
          %377 = vsyncadd [#allocation16], %s376
          %s378 = sshll.u32 [#allocation15], 4
          %s379 = int_to_ptr.vmem [resolvable:$true] %s378
          %384 = dma.hbm_to_vmem [thread:$0]  %s9, 2048, %s379, [#allocation16], 128, 128, 8
        $region40: #{tpu_custom_call.1} parent=11 // pred_fallthru
          _
        // Predicated region
        $region41: #{tpu_custom_call.1} parent=11 // pred_check
          %p385 = pneg %p257
        $region42: #{tpu_custom_call.1} parent=11 // pred_check_branch
          %387 = sbr.rel (%p385) target = $region44
        $region43: #{tpu_custom_call.1} parent=11 // pred_region
          _
        $region44: #{tpu_custom_call.1} parent=11 // pred_fallthru
          _
      $region12: #{tpu_custom_call.1} parent=5 // pred_fallthru
        _
      %p388 = scmp.lt.s32.totalorder %s37, 8
      // Predicated region
      $region45: #{tpu_custom_call.1} parent=5 // pred_check
        %p389 = pneg %p388
      $region46: #{tpu_custom_call.1} parent=5 // pred_check_branch
        %391 = sbr.rel (%p389) target = $region48
      $region47: #{tpu_custom_call.1} parent=5 // pred_region
        // Predicated region
        $region49: #{tpu_custom_call.1} parent=47 // pred_check
          %p392 = pneg %p57
        $region50: #{tpu_custom_call.1} parent=47 // pred_check_branch
          %394 = sbr.rel (%p392) target = $region52
        $region51: #{tpu_custom_call.1} parent=47 // pred_region
          %s395 = sand.u32 %s47, 1
          %s396 = scalar_lea.sflag [#allocation7], %s395
          %s397 = sand.u32 %s47, 1
          %s398 = scalar_lea.vmem [#allocation6], %s397
          %s400 = ssub.s32 16, 16
          %401 = vsyncadd %s396, %s400
          %s402 = smul.addr %s37, 16
          %s403 = scalar_lea.hbm %s1, %s402
          %s405 = sshll.u32 %s398, 4
          %s406 = int_to_ptr.vmem [resolvable:$true] %s405
          %408 = dma.hbm_to_vmem [thread:$0]  %s403, 16, %s406, %s396
        $region52: #{tpu_custom_call.1} parent=47 // pred_fallthru
          _
        // Predicated region
        $region53: #{tpu_custom_call.1} parent=47 // pred_check
          %p409 = pneg %p125
        $region54: #{tpu_custom_call.1} parent=47 // pred_check_branch
          %411 = sbr.rel (%p409) target = $region56
        $region55: #{tpu_custom_call.1} parent=47 // pred_region
          %s412 = sand.u32 %s37, 1
          %s413 = scalar_lea.sflag [#allocation10], %s412
          %s414 = sand.u32 %s115, 1
          %s415 = smul.addr %s414, 8
          %s416 = scalar_lea.vmem [#allocation9], %s415
          %s418 = ssub.s32 128, 128
          %419 = vsyncadd %s413, %s418
          %s420 = smul.addr %s37, 128
          %s421 = scalar_lea.hbm %s4, %s420
          %s423 = sshll.u32 %s416, 4
          %s424 = int_to_ptr.vmem [resolvable:$true] %s423
          %426 = dma.hbm_to_vmem [thread:$0]  %s421, 128, %s424, %s413
        $region56: #{tpu_custom_call.1} parent=47 // pred_fallthru
          _
      $region48: #{tpu_custom_call.1} parent=5 // pred_fallthru
        _
      %p427 = scmp.le.s32.totalorder 1, %s37
      %p428 = scmp.lt.s32.totalorder %s37, 9
      %p429 = pnand %p427, %p428
      %p430 = pneg %p429
      // Predicated region
      $region57: #{tpu_custom_call.1} parent=5 // pred_check
        _
      $region58: #{tpu_custom_call.1} parent=5 // pred_check_branch
        %432 = sbr.rel (%p429) target = $region60
      $region59: #{tpu_custom_call.1} parent=5 // pred_region
        %s433 = ssub.s32 %s37, 1
        %s434 = sand.u32 %s50, 1
        %s435 = scalar_lea.sflag [#allocation7], %s434
        %s436 = sand.u32 %s50, 1
        %s437 = scalar_lea.vmem [#allocation6], %s436
        // Predicated region
        $region61: #{tpu_custom_call.1} parent=59 // pred_check
          %p438 = pneg %p63
        $region62: #{tpu_custom_call.1} parent=59 // pred_check_branch
          %440 = sbr.rel (%p438) target = $region64
        $region63: #{tpu_custom_call.1} parent=59 // pred_region
          %441 = dma.done %s435, 16
        $region64: #{tpu_custom_call.1} parent=59 // pred_fallthru
          _
        %s442 = sand.u32 %s42, 1
        %s443 = scalar_lea.sflag [#allocation10], %s442
        %s444 = sand.u32 %s118, 1
        %s445 = smul.addr %s444, 8
        %s446 = scalar_lea.vmem [#allocation9], %s445
        // Predicated region
        $region65: #{tpu_custom_call.1} parent=59 // pred_check
          %p447 = pneg %p131
        $region66: #{tpu_custom_call.1} parent=59 // pred_check_branch
          %449 = sbr.rel (%p447) target = $region68
        $region67: #{tpu_custom_call.1} parent=59 // pred_region
          %450 = dma.done %s443, 128
        $region68: #{tpu_custom_call.1} parent=59 // pred_fallthru
          _
        // Predicated region
        $region69: #{tpu_custom_call.1} parent=59 // pred_check
          %p451 = pneg %p152
        $region70: #{tpu_custom_call.1} parent=59 // pred_check_branch
          %453 = sbr.rel (%p451) target = $region72
        $region71: #{tpu_custom_call.1} parent=59 // pred_region
          %454 = dma.done [#allocation10], 6144
        $region72: #{tpu_custom_call.1} parent=59 // pred_fallthru
          _
        // Predicated region
        $region73: #{tpu_custom_call.1} parent=59 // pred_check
          %p455 = pneg %p173
        $region74: #{tpu_custom_call.1} parent=59 // pred_check_branch
          %457 = sbr.rel (%p455) target = $region76
        $region75: #{tpu_custom_call.1} parent=59 // pred_region
          %458 = dma.done [#allocation13], 6144
        $region76: #{tpu_custom_call.1} parent=59 // pred_fallthru
          _
        // Predicated region
        $region77: #{tpu_custom_call.1} parent=59 // pred_check
          %p459 = pneg %p215
        $region78: #{tpu_custom_call.1} parent=59 // pred_check_branch
          %461 = sbr.rel (%p459) target = $region80
        $region79: #{tpu_custom_call.1} parent=59 // pred_region
          %462 = dma.done [#allocation13], 2048
        $region80: #{tpu_custom_call.1} parent=59 // pred_fallthru
          _
        // Predicated region
        $region81: #{tpu_custom_call.1} parent=59 // pred_check
          %p463 = pneg %p236
        $region82: #{tpu_custom_call.1} parent=59 // pred_check_branch
          %465 = sbr.rel (%p463) target = $region84
        $region83: #{tpu_custom_call.1} parent=59 // pred_region
          %466 = dma.done [#allocation16], 2048
        $region84: #{tpu_custom_call.1} parent=59 // pred_fallthru
          _
        %s467 = sand.u32 %s50, 1
        %s468 = scalar_lea.sflag [#allocation7], %s467
        %s469 = sand.u32 %s50, 1
        %s470 = scalar_lea.vmem [#allocation6], %s469
        %p471 = pneg %p63
        %p472 = pneg %p60
        %p473 = pneg %p84
        %p474 = pneg %p81
        %p475 = pneg %p105
        %p476 = pneg %p102
        %s477 = sand.u32 %s42, 1
        %s478 = scalar_lea.sflag [#allocation10], %s477
        %s479 = sand.u32 %s118, 1
        %s480 = smul.addr %s479, 8
        %s481 = scalar_lea.vmem [#allocation9], %s480
        %p482 = pneg %p131
        %p483 = pneg %p128
        %p484 = pneg %p152
        %p485 = pneg %p149
        %p486 = pneg %p173
        %p487 = pneg %p170
        %p488 = pneg %p194
        %p489 = pneg %p191
        %p490 = pneg %p215
        %p491 = pneg %p212
        %p492 = pneg %p236
        %p493 = pneg %p233
        %p494 = pneg %p257
        %p495 = pneg %p254
        %p496 = pneg %p283
        %p497 = pneg %p280
        %s498 = sand.u32 %s270, 1
        %s499 = scalar_lea.sflag [#allocation8], %s498
        %s500 = sand.u32 %s270, 1
        %s501 = scalar_lea.vmem [#allocation17], %s500
        %p502 = pneg %p309
        %p503 = pneg %p306
        %s504 = sand.u32 %s296, 1
        %s505 = scalar_lea.sflag [#allocation19], %s504
        %s506 = sand.u32 %s296, 1
        %s507 = scalar_lea.vmem [#allocation18], %s506
        %p508 = scmp.eq.s32.totalorder %s42, 0
        // Predicated region
        $region85: #{tpu_custom_call.1} parent=59 // pred_check
          %p509 = pneg %p508
        $region86: #{tpu_custom_call.1} parent=59 // pred_check_branch
          %511 = sbr.rel (%p509) target = $region88
        $region87: #{tpu_custom_call.1} parent=59 // pred_region
          %v512 = vld [vmem:[%s2] sm:$0x1]
          %513 = vst [vmem:[#allocation2] sm:$0x1] %v512
          %v514 = vld [vmem:[%s3] sm:$0x1]
          %515 = vst [vmem:[#allocation3] sm:$0x1] %v514
        $region88: #{tpu_custom_call.1} parent=59 // pred_fallthru
          _
        %v516 = vld [vmem:[%s437] sm:$0x1]
        %v517 = vld [vmem:[#allocation2] sm:$0x1]
        %v518 = vld [vmem:[#allocation11] sm:$0xff]
        %v519 = vld [vmem:[#allocation11 + $0x8] sm:$0xff]
        %v520 = vld [vmem:[#allocation11 + $0x10] sm:$0xff]
        %v521 = vld [vmem:[#allocation11 + $0x18] sm:$0xff]
        %v522 = vld [vmem:[#allocation11 + $0x20] sm:$0xff]
        %v523 = vld [vmem:[#allocation11 + $0x28] sm:$0xff]
        %v524 = vld [vmem:[#allocation11 + $0x30] sm:$0xff]
        %v525 = vld [vmem:[#allocation11 + $0x38] sm:$0xff]
        %v526 = vld [vmem:[#allocation11 + $0x40] sm:$0xff]
        %v527 = vld [vmem:[#allocation11 + $0x48] sm:$0xff]
        %v528 = vld [vmem:[#allocation11 + $0x50] sm:$0xff]
        %v529 = vld [vmem:[#allocation11 + $0x58] sm:$0xff]
        %v530 = vld [vmem:[#allocation11 + $0x60] sm:$0xff]
        %v531 = vld [vmem:[#allocation11 + $0x68] sm:$0xff]
        %v532 = vld [vmem:[#allocation11 + $0x70] sm:$0xff]
        %v533 = vld [vmem:[#allocation11 + $0x78] sm:$0xff]
        %v534 = vld [vmem:[#allocation11 + $0x80] sm:$0xff]
        %v535 = vld [vmem:[#allocation11 + $0x88] sm:$0xff]
        %v536 = vld [vmem:[#allocation11 + $0x90] sm:$0xff]
        %v537 = vld [vmem:[#allocation11 + $0x98] sm:$0xff]
        %v538 = vld [vmem:[#allocation11 + $0xa0] sm:$0xff]
        %v539 = vld [vmem:[#allocation11 + $0xa8] sm:$0xff]
        %v540 = vld [vmem:[#allocation11 + $0xb0] sm:$0xff]
        %v541 = vld [vmem:[#allocation11 + $0xb8] sm:$0xff]
        %v542 = vld [vmem:[#allocation11 + $0xc0] sm:$0xff]
        %v543 = vld [vmem:[#allocation11 + $0xc8] sm:$0xff]
        %v544 = vld [vmem:[#allocation11 + $0xd0] sm:$0xff]
        %v545 = vld [vmem:[#allocation11 + $0xd8] sm:$0xff]
        %v546 = vld [vmem:[#allocation11 + $0xe0] sm:$0xff]
        %v547 = vld [vmem:[#allocation11 + $0xe8] sm:$0xff]
        %v548 = vld [vmem:[#allocation11 + $0xf0] sm:$0xff]
        %v549 = vld [vmem:[#allocation11 + $0xf8] sm:$0xff]
        %v550 = vld [vmem:[#allocation11 + $0x100] sm:$0xff]
        %v551 = vld [vmem:[#allocation11 + $0x108] sm:$0xff]
        %v552 = vld [vmem:[#allocation11 + $0x110] sm:$0xff]
        %v553 = vld [vmem:[#allocation11 + $0x118] sm:$0xff]
        %v554 = vld [vmem:[#allocation11 + $0x120] sm:$0xff]
        %v555 = vld [vmem:[#allocation11 + $0x128] sm:$0xff]
        %v556 = vld [vmem:[#allocation11 + $0x130] sm:$0xff]
        %v557 = vld [vmem:[#allocation11 + $0x138] sm:$0xff]
        %v558 = vld [vmem:[#allocation11 + $0x140] sm:$0xff]
        %v559 = vld [vmem:[#allocation11 + $0x148] sm:$0xff]
        %v560 = vld [vmem:[#allocation11 + $0x150] sm:$0xff]
        %v561 = vld [vmem:[#allocation11 + $0x158] sm:$0xff]
        %v562 = vld [vmem:[#allocation11 + $0x160] sm:$0xff]
        %v563 = vld [vmem:[#allocation11 + $0x168] sm:$0xff]
        %v564 = vld [vmem:[#allocation11 + $0x170] sm:$0xff]
        %v565 = vld [vmem:[#allocation11 + $0x178] sm:$0xff]
        %v566 = vld [vmem:[#allocation12] sm:$0xff]
        %v567 = vld [vmem:[#allocation12 + $0x8] sm:$0xff]
        %v568 = vld [vmem:[#allocation12 + $0x10] sm:$0xff]
        %v569 = vld [vmem:[#allocation12 + $0x18] sm:$0xff]
        %v570 = vld [vmem:[#allocation12 + $0x20] sm:$0xff]
        %v571 = vld [vmem:[#allocation12 + $0x28] sm:$0xff]
        %v572 = vld [vmem:[#allocation12 + $0x30] sm:$0xff]
        %v573 = vld [vmem:[#allocation12 + $0x38] sm:$0xff]
        %v574 = vld [vmem:[#allocation12 + $0x40] sm:$0xff]
        %v575 = vld [vmem:[#allocation12 + $0x48] sm:$0xff]
        %v576 = vld [vmem:[#allocation12 + $0x50] sm:$0xff]
        %v577 = vld [vmem:[#allocation12 + $0x58] sm:$0xff]
        %v578 = vld [vmem:[#allocation12 + $0x60] sm:$0xff]
        %v579 = vld [vmem:[#allocation12 + $0x68] sm:$0xff]
        %v580 = vld [vmem:[#allocation12 + $0x70] sm:$0xff]
        %v581 = vld [vmem:[#allocation12 + $0x78] sm:$0xff]
        %v582 = vld [vmem:[#allocation12 + $0x80] sm:$0xff]
        %v583 = vld [vmem:[#allocation12 + $0x88] sm:$0xff]
        %v584 = vld [vmem:[#allocation12 + $0x90] sm:$0xff]
        %v585 = vld [vmem:[#allocation12 + $0x98] sm:$0xff]
        %v586 = vld [vmem:[#allocation12 + $0xa0] sm:$0xff]
        %v587 = vld [vmem:[#allocation12 + $0xa8] sm:$0xff]
        %v588 = vld [vmem:[#allocation12 + $0xb0] sm:$0xff]
        %v589 = vld [vmem:[#allocation12 + $0xb8] sm:$0xff]
        %v590 = vld [vmem:[#allocation12 + $0xc0] sm:$0xff]
        %v591 = vld [vmem:[#allocation12 + $0xc8] sm:$0xff]
        %v592 = vld [vmem:[#allocation12 + $0xd0] sm:$0xff]
        %v593 = vld [vmem:[#allocation12 + $0xd8] sm:$0xff]
        %v594 = vld [vmem:[#allocation12 + $0xe0] sm:$0xff]
        %v595 = vld [vmem:[#allocation12 + $0xe8] sm:$0xff]
        %v596 = vld [vmem:[#allocation12 + $0xf0] sm:$0xff]
        %v597 = vld [vmem:[#allocation12 + $0xf8] sm:$0xff]
        %v598 = vld [vmem:[#allocation12 + $0x100] sm:$0xff]
        %v599 = vld [vmem:[#allocation12 + $0x108] sm:$0xff]
        %v600 = vld [vmem:[#allocation12 + $0x110] sm:$0xff]
        %v601 = vld [vmem:[#allocation12 + $0x118] sm:$0xff]
        %v602 = vld [vmem:[#allocation12 + $0x120] sm:$0xff]
        %v603 = vld [vmem:[#allocation12 + $0x128] sm:$0xff]
        %v604 = vld [vmem:[#allocation12 + $0x130] sm:$0xff]
        %v605 = vld [vmem:[#allocation12 + $0x138] sm:$0xff]
        %v606 = vld [vmem:[#allocation12 + $0x140] sm:$0xff]
        %v607 = vld [vmem:[#allocation12 + $0x148] sm:$0xff]
        %v608 = vld [vmem:[#allocation12 + $0x150] sm:$0xff]
        %v609 = vld [vmem:[#allocation12 + $0x158] sm:$0xff]
        %v610 = vld [vmem:[#allocation12 + $0x160] sm:$0xff]
        %v611 = vld [vmem:[#allocation12 + $0x168] sm:$0xff]
        %v612 = vld [vmem:[#allocation12 + $0x170] sm:$0xff]
        %v613 = vld [vmem:[#allocation12 + $0x178] sm:$0xff]
        %614 = vmatprep.subr.mxu0 %v612
        %615 = vmatpush1.msra.mxu0 %v611
        %616 = vmatprep.subr.mxu0 %v609
        %617 = vmatpush1.msra.mxu0 %v608
        %618 = vmatprep.subr.mxu0 %v606
        %619 = vmatpush1.msra.mxu0 %v605
        %620 = vmatprep.subr.mxu0 %v603
        %621 = vmatpush1.msra.mxu0 %v602
        %622 = vmatprep.subr.mxu0 %v600
        %623 = vmatpush1.msra.mxu0 %v599
        %624 = vmatprep.subr.mxu0 %v597
        %625 = vmatpush1.msra.mxu0 %v596
        %626 = vmatprep.subr.mxu0 %v594
        %627 = vmatpush1.msra.mxu0 %v593
        %628 = vmatprep.subr.mxu0 %v591
        %629 = vmatpush1.msra.mxu0 %v590
        %630 = vmatprep.subr.mxu0 %v588
        %631 = vmatpush1.msra.mxu0 %v587
        %632 = vmatprep.subr.mxu0 %v585
        %633 = vmatpush1.msra.mxu0 %v584
        %634 = vmatprep.subr.mxu0 %v582
        %635 = vmatpush1.msra.mxu0 %v581
        %636 = vmatprep.subr.mxu0 %v579
        %637 = vmatpush1.msra.mxu0 %v578
        %638 = vmatprep.subr.mxu0 %v576
        %639 = vmatpush1.msra.mxu0 %v575
        %640 = vmatprep.subr.mxu0 %v573
        %641 = vmatpush1.msra.mxu0 %v572
        %642 = vmatprep.subr.mxu0 %v570
        %643 = vmatpush1.msra.mxu0 %v569
        %644 = vmatprep.subr.mxu0 %v567
        %645 = vmatpush1.msra.mxu0 %v566
        %646 = vmatprep.subr.mxu0 0.0
        %647 = vmatpush2.msra.mxu0 0.0
        %648 = vmatprep.subr.mxu0 0.0
        %649 = vmatpush2.msra.mxu0 0.0
        %650 = vmatprep.subr.mxu0 0.0
        %651 = vmatpush2.msra.mxu0 0.0
        %652 = vmatprep.subr.mxu0 0.0
        %653 = vmatpush2.msra.mxu0 0.0
        %654 = vmatprep.subr.mxu0 0.0
        %655 = vmatpush2.msra.mxu0 0.0
        %656 = vmatprep.subr.mxu0 0.0
        %657 = vmatpush2.msra.mxu0 0.0
        %658 = vmatprep.subr.mxu0 0.0
        %659 = vmatpush2.msra.mxu0 0.0
        %660 = vmatprep.subr.mxu0 0.0
        %661 = vmatpush2.msra.mxu0 0.0
        %662 = vmatprep.subr.mxu0 0.0
        %663 = vmatpush2.msra.mxu0 0.0
        %664 = vmatprep.subr.mxu0 0.0
        %665 = vmatpush2.msra.mxu0 0.0
        %666 = vmatprep.subr.mxu0 0.0
        %667 = vmatpush2.msra.mxu0 0.0
        %668 = vmatprep.subr.mxu0 0.0
        %669 = vmatpush2.msra.mxu0 0.0
        %670 = vmatprep.subr.mxu0 0.0
        %671 = vmatpush2.msra.mxu0 0.0
        %672 = vmatprep.subr.mxu0 0.0
        %673 = vmatpush2.msra.mxu0 0.0
        %674 = vmatprep.subr.mxu0 0.0
        %675 = vmatpush2.msra.mxu0 0.0
        %676 = vmatprep.subr.mxu0 0.0
        %677 = vmatpush2.msra.mxu0 0.0
        %678 = vmatprep.mubr.f32.mxu0 0.0
        %679 = vmatmul.mubr.f32.gmra.mxu0 %v517
        %v680 = vpop.f32.mrf.mxu0
        %v681 = vadd.f32 0.0, %v680
        %v682 = vpop.f32.mrf.mxu0
        %v683 = vadd.f32 0.0, %v682
        %684 = vdwg.mxu0
        %685 = vmatprep.subr.mxu0 0.0
        %686 = vmatpush1.msra.mxu0 %v613
        %687 = vmatprep.subr.mxu0 0.0
        %688 = vmatpush1.msra.mxu0 %v610
        %689 = vmatprep.subr.mxu0 0.0
        %690 = vmatpush1.msra.mxu0 %v607
        %691 = vmatprep.subr.mxu0 0.0
        %692 = vmatpush1.msra.mxu0 %v604
        %693 = vmatprep.subr.mxu0 0.0
        %694 = vmatpush1.msra.mxu0 %v601
        %695 = vmatprep.subr.mxu0 0.0
        %696 = vmatpush1.msra.mxu0 %v598
        %697 = vmatprep.subr.mxu0 0.0
        %698 = vmatpush1.msra.mxu0 %v595
        %699 = vmatprep.subr.mxu0 0.0
        %700 = vmatpush1.msra.mxu0 %v592
        %701 = vmatprep.subr.mxu0 0.0
        %702 = vmatpush1.msra.mxu0 %v589
        %703 = vmatprep.subr.mxu0 0.0
        %704 = vmatpush1.msra.mxu0 %v586
        %705 = vmatprep.subr.mxu0 0.0
        %706 = vmatpush1.msra.mxu0 %v583
        %707 = vmatprep.subr.mxu0 0.0
        %708 = vmatpush1.msra.mxu0 %v580
        %709 = vmatprep.subr.mxu0 0.0
        %710 = vmatpush1.msra.mxu0 %v577
        %711 = vmatprep.subr.mxu0 0.0
        %712 = vmatpush1.msra.mxu0 %v574
        %713 = vmatprep.subr.mxu0 0.0
        %714 = vmatpush1.msra.mxu0 %v571
        %715 = vmatprep.subr.mxu0 0.0
        %716 = vmatpush1.msra.mxu0 %v568
        %717 = vmatprep.subr.mxu0 0.0
        %718 = vmatpush2.msra.mxu0 0.0
        %719 = vmatprep.subr.mxu0 0.0
        %720 = vmatpush2.msra.mxu0 0.0
        %721 = vmatprep.subr.mxu0 0.0
        %722 = vmatpush2.msra.mxu0 0.0
        %723 = vmatprep.subr.mxu0 0.0
        %724 = vmatpush2.msra.mxu0 0.0
        %725 = vmatprep.subr.mxu0 0.0
        %726 = vmatpush2.msra.mxu0 0.0
        %727 = vmatprep.subr.mxu0 0.0
        %728 = vmatpush2.msra.mxu0 0.0
        %729 = vmatprep.subr.mxu0 0.0
        %730 = vmatpush2.msra.mxu0 0.0
        %731 = vmatprep.subr.mxu0 0.0
        %732 = vmatpush2.msra.mxu0 0.0
        %733 = vmatprep.subr.mxu0 0.0
        %734 = vmatpush2.msra.mxu0 0.0
        %735 = vmatprep.subr.mxu0 0.0
        %736 = vmatpush2.msra.mxu0 0.0
        %737 = vmatprep.subr.mxu0 0.0
        %738 = vmatpush2.msra.mxu0 0.0
        %739 = vmatprep.subr.mxu0 0.0
        %740 = vmatpush2.msra.mxu0 0.0
        %741 = vmatprep.subr.mxu0 0.0
        %742 = vmatpush2.msra.mxu0 0.0
        %743 = vmatprep.subr.mxu0 0.0
        %744 = vmatpush2.msra.mxu0 0.0
        %745 = vmatprep.subr.mxu0 0.0
        %746 = vmatpush2.msra.mxu0 0.0
        %747 = vmatprep.subr.mxu0 0.0
        %748 = vmatpush2.msra.mxu0 0.0
        %749 = vmatprep.mubr.f32.mxu0 0.0
        %750 = vmatmul.mubr.f32.gmra.mxu0 %v517
        %v751 = vpop.f32.mrf.mxu0
        %v752 = vadd.f32 0.0, %v751
        %v753 = vpop.f32.mrf.mxu0
        %754 = vdwg.mxu0
        %755 = vmatprep.subr.mxu0 %v564
        %756 = vmatpush1.msra.mxu0 %v563
        %757 = vmatprep.subr.mxu0 %v561
        %758 = vmatpush1.msra.mxu0 %v560
        %759 = vmatprep.subr.mxu0 %v558
        %760 = vmatpush1.msra.mxu0 %v557
        %761 = vmatprep.subr.mxu0 %v555
        %762 = vmatpush1.msra.mxu0 %v554
        %763 = vmatprep.subr.mxu0 %v552
        %764 = vmatpush1.msra.mxu0 %v551
        %765 = vmatprep.subr.mxu0 %v549
        %766 = vmatpush1.msra.mxu0 %v548
        %767 = vmatprep.subr.mxu0 %v546
        %768 = vmatpush1.msra.mxu0 %v545
        %769 = vmatprep.subr.mxu0 %v543
        %770 = vmatpush1.msra.mxu0 %v542
        %771 = vmatprep.subr.mxu0 %v540
        %772 = vmatpush1.msra.mxu0 %v539
        %773 = vmatprep.subr.mxu0 %v537
        %774 = vmatpush1.msra.mxu0 %v536
        %775 = vmatprep.subr.mxu0 %v534
        %776 = vmatpush1.msra.mxu0 %v533
        %777 = vmatprep.subr.mxu0 %v531
        %778 = vmatpush1.msra.mxu0 %v530
        %779 = vmatprep.subr.mxu0 %v528
        %780 = vmatpush1.msra.mxu0 %v527
        %781 = vmatprep.subr.mxu0 %v525
        %782 = vmatpush1.msra.mxu0 %v524
        %783 = vmatprep.subr.mxu0 %v522
        %784 = vmatpush1.msra.mxu0 %v521
        %785 = vmatprep.subr.mxu0 %v519
        %786 = vmatpush1.msra.mxu0 %v518
        %787 = vmatprep.subr.mxu0 0.0
        %788 = vmatpush2.msra.mxu0 0.0
        %789 = vmatprep.subr.mxu0 0.0
        %790 = vmatpush2.msra.mxu0 0.0
        %791 = vmatprep.subr.mxu0 0.0
        %792 = vmatpush2.msra.mxu0 0.0
        %793 = vmatprep.subr.mxu0 0.0
        %794 = vmatpush2.msra.mxu0 0.0
        %795 = vmatprep.subr.mxu0 0.0
        %796 = vmatpush2.msra.mxu0 0.0
        %797 = vmatprep.subr.mxu0 0.0
        %798 = vmatpush2.msra.mxu0 0.0
        %799 = vmatprep.subr.mxu0 0.0
        %800 = vmatpush2.msra.mxu0 0.0
        %801 = vmatprep.subr.mxu0 0.0
        %802 = vmatpush2.msra.mxu0 0.0
        %803 = vmatprep.subr.mxu0 0.0
        %804 = vmatpush2.msra.mxu0 0.0
        %805 = vmatprep.subr.mxu0 0.0
        %806 = vmatpush2.msra.mxu0 0.0
        %807 = vmatprep.subr.mxu0 0.0
        %808 = vmatpush2.msra.mxu0 0.0
        %809 = vmatprep.subr.mxu0 0.0
        %810 = vmatpush2.msra.mxu0 0.0
        %811 = vmatprep.subr.mxu0 0.0
        %812 = vmatpush2.msra.mxu0 0.0
        %813 = vmatprep.subr.mxu0 0.0
        %814 = vmatpush2.msra.mxu0 0.0
        %815 = vmatprep.subr.mxu0 0.0
        %816 = vmatpush2.msra.mxu0 0.0
        %817 = vmatprep.subr.mxu0 0.0
        %818 = vmatpush2.msra.mxu0 0.0
        %819 = vmatprep.mubr.f32.mxu0 0.0
        %820 = vmatmul.mubr.f32.gmra.mxu0 %v516
        %v821 = vpop.f32.mrf.mxu0
        %v822 = vadd.f32 %v681, %v821
        %v823 = vpop.f32.mrf.mxu0
        %v824 = vadd.f32 %v683, %v823
        %825 = vdwg.mxu0
        %826 = vmatprep.subr.mxu0 0.0
        %827 = vmatpush1.msra.mxu0 %v565
        %828 = vmatprep.subr.mxu0 0.0
        %829 = vmatpush1.msra.mxu0 %v562
        %830 = vmatprep.subr.mxu0 0.0
        %831 = vmatpush1.msra.mxu0 %v559
        %832 = vmatprep.subr.mxu0 0.0
        %833 = vmatpush1.msra.mxu0 %v556
        %834 = vmatprep.subr.mxu0 0.0
        %835 = vmatpush1.msra.mxu0 %v553
        %836 = vmatprep.subr.mxu0 0.0
        %837 = vmatpush1.msra.mxu0 %v550
        %838 = vmatprep.subr.mxu0 0.0
        %839 = vmatpush1.msra.mxu0 %v547
        %840 = vmatprep.subr.mxu0 0.0
        %841 = vmatpush1.msra.mxu0 %v544
        %842 = vmatprep.subr.mxu0 0.0
        %843 = vmatpush1.msra.mxu0 %v541
        %844 = vmatprep.subr.mxu0 0.0
        %845 = vmatpush1.msra.mxu0 %v538
        %846 = vmatprep.subr.mxu0 0.0
        %847 = vmatpush1.msra.mxu0 %v535
        %848 = vmatprep.subr.mxu0 0.0
        %849 = vmatpush1.msra.mxu0 %v532
        %850 = vmatprep.subr.mxu0 0.0
        %851 = vmatpush1.msra.mxu0 %v529
        %852 = vmatprep.subr.mxu0 0.0
        %853 = vmatpush1.msra.mxu0 %v526
        %854 = vmatprep.subr.mxu0 0.0
        %855 = vmatpush1.msra.mxu0 %v523
        %856 = vmatprep.subr.mxu0 0.0
        %857 = vmatpush1.msra.mxu0 %v520
        %858 = vmatprep.subr.mxu0 0.0
        %859 = vmatpush2.msra.mxu0 0.0
        %860 = vmatprep.subr.mxu0 0.0
        %861 = vmatpush2.msra.mxu0 0.0
        %862 = vmatprep.subr.mxu0 0.0
        %863 = vmatpush2.msra.mxu0 0.0
        %864 = vmatprep.subr.mxu0 0.0
        %865 = vmatpush2.msra.mxu0 0.0
        %866 = vmatprep.subr.mxu0 0.0
        %867 = vmatpush2.msra.mxu0 0.0
        %868 = vmatprep.subr.mxu0 0.0
        %869 = vmatpush2.msra.mxu0 0.0
        %870 = vmatprep.subr.mxu0 0.0
        %871 = vmatpush2.msra.mxu0 0.0
        %872 = vmatprep.subr.mxu0 0.0
        %873 = vmatpush2.msra.mxu0 0.0
        %874 = vmatprep.subr.mxu0 0.0
        %875 = vmatpush2.msra.mxu0 0.0
        %876 = vmatprep.subr.mxu0 0.0
        %877 = vmatpush2.msra.mxu0 0.0
        %878 = vmatprep.subr.mxu0 0.0
        %879 = vmatpush2.msra.mxu0 0.0
        %880 = vmatprep.subr.mxu0 0.0
        %881 = vmatpush2.msra.mxu0 0.0
        %882 = vmatprep.subr.mxu0 0.0
        %883 = vmatpush2.msra.mxu0 0.0
        %884 = vmatprep.subr.mxu0 0.0
        %885 = vmatpush2.msra.mxu0 0.0
        %886 = vmatprep.subr.mxu0 0.0
        %887 = vmatpush2.msra.mxu0 0.0
        %888 = vmatprep.subr.mxu0 0.0
        %889 = vmatpush2.msra.mxu0 0.0
        %890 = vmatprep.mubr.f32.mxu0 0.0
        %891 = vmatmul.mubr.f32.gmra.mxu0 %v516
        %v892 = vpop.f32.mrf.mxu0
        %v893 = vadd.f32 %v752, %v892
        %v894 = vpop.f32.mrf.mxu0
        %895 = vdwg.mxu0
        %v896 = vld [vmem:[%s7] sm:$0x7]
        %v898 = vlaneseq
        %v899 = vshrl.u32 %v898, 7
        %v900 = vsub.s32 0, %v899
        %v901 = vrot.slane %v896, %v900
        %v902 = vlaneseq
        %v903 = vshrl.u32 %v902, 7
        %v904 = vsub.s32 1, %v903
        %v905 = vrot.slane %v896, %v904
        %v906 = vlaneseq
        %v907 = vshrl.u32 %v906, 7
        %v908 = vsub.s32 2, %v907
        %v909 = vrot.slane %v896, %v908
        %v913 = vadd.f32 %v822, %v901
        %v914 = vadd.f32 %v824, %v905
        %v915 = vadd.f32 %v893, %v909
        %v916 = vxor.u32 %v913, 2147483648
        %v917 = vmul.f32 %v916, 1.442695
        %v918 = vpow.pop %v917
        %v919 = vadd.f32 %v918, 1.0
        %v920 = vrcp.pop %v919
        %v921 = vmul.f32 1.0, %v920
        %v922 = vxor.u32 %v914, 2147483648
        %v923 = vmul.f32 %v922, 1.442695
        %v924 = vpow.pop %v923
        %v925 = vadd.f32 %v924, 1.0
        %v926 = vrcp.pop %v925
        %v927 = vmul.f32 1.0, %v926
        %v928 = vtanh.pop %v915
        %s929 = sld [smem:[#allocation5 + %s42]]
        %p930 = scmp.eq.s32.totalorder %s929, 0
        // Predicated region
        $region89: #{tpu_custom_call.1} parent=59 // pred_check
          %p931 = pneg %p930
        $region90: #{tpu_custom_call.1} parent=59 // pred_check_branch
          %933 = sbr.rel (%p931) target = $region92
        $region91: #{tpu_custom_call.1} parent=59 // pred_region
          %v934 = vsub.f32 1.0, %v921
          %v935 = vld [vmem:[#allocation3] sm:$0x1]
          %v936 = vmul.f32 %v934, %v935
          %v937 = vmul.f32 %v921, %v928
          %v938 = vadd.f32 %v936, %v937
          %939 = vst [vmem:[#allocation3] sm:$0x1] %v938
        $region92: #{tpu_custom_call.1} parent=59 // pred_fallthru
          _
        %p940 = scmp.gt.s32.totalorder %s929, 0
        // Predicated region
        $region93: #{tpu_custom_call.1} parent=59 // pred_check
          %p941 = pneg %p940
        $region94: #{tpu_custom_call.1} parent=59 // pred_check_branch
          %943 = sbr.rel (%p941) target = $region96
        $region95: #{tpu_custom_call.1} parent=59 // pred_region
          %v944 = vld [vmem:[%s446] sm:$0xff]
          %v945 = vld [vmem:[#allocation14] sm:$0xff]
          %v946 = vld [vmem:[#allocation14 + $0x8] sm:$0xff]
          %v947 = vld [vmem:[#allocation14 + $0x10] sm:$0xff]
          %v948 = vld [vmem:[#allocation14 + $0x18] sm:$0xff]
          %v949 = vld [vmem:[#allocation14 + $0x20] sm:$0xff]
          %v950 = vld [vmem:[#allocation14 + $0x28] sm:$0xff]
          %v951 = vld [vmem:[#allocation14 + $0x30] sm:$0xff]
          %v952 = vld [vmem:[#allocation14 + $0x38] sm:$0xff]
          %v953 = vld [vmem:[#allocation14 + $0x40] sm:$0xff]
          %v954 = vld [vmem:[#allocation14 + $0x48] sm:$0xff]
          %v955 = vld [vmem:[#allocation14 + $0x50] sm:$0xff]
          %v956 = vld [vmem:[#allocation14 + $0x58] sm:$0xff]
          %v957 = vld [vmem:[#allocation14 + $0x60] sm:$0xff]
          %v958 = vld [vmem:[#allocation14 + $0x68] sm:$0xff]
          %v959 = vld [vmem:[#allocation14 + $0x70] sm:$0xff]
          %v960 = vld [vmem:[#allocation14 + $0x78] sm:$0xff]
          %v961 = vld [vmem:[%s10] sm:$0x1]
          %962 = vmatprep.subr.mxu0 0.0
          %963 = vmatpush1.msra.mxu0 %v960
          %964 = vmatprep.subr.mxu0 0.0
          %965 = vmatpush1.msra.mxu0 %v959
          %966 = vmatprep.subr.mxu0 0.0
          %967 = vmatpush1.msra.mxu0 %v958
          %968 = vmatprep.subr.mxu0 0.0
          %969 = vmatpush1.msra.mxu0 %v957
          %970 = vmatprep.subr.mxu0 0.0
          %971 = vmatpush1.msra.mxu0 %v956
          %972 = vmatprep.subr.mxu0 0.0
          %973 = vmatpush1.msra.mxu0 %v955
          %974 = vmatprep.subr.mxu0 0.0
          %975 = vmatpush1.msra.mxu0 %v954
          %976 = vmatprep.subr.mxu0 0.0
          %977 = vmatpush1.msra.mxu0 %v953
          %978 = vmatprep.subr.mxu0 0.0
          %979 = vmatpush1.msra.mxu0 %v952
          %980 = vmatprep.subr.mxu0 0.0
          %981 = vmatpush1.msra.mxu0 %v951
          %982 = vmatprep.subr.mxu0 0.0
          %983 = vmatpush1.msra.mxu0 %v950
          %984 = vmatprep.subr.mxu0 0.0
          %985 = vmatpush1.msra.mxu0 %v949
          %986 = vmatprep.subr.mxu0 0.0
          %987 = vmatpush1.msra.mxu0 %v948
          %988 = vmatprep.subr.mxu0 0.0
          %989 = vmatpush1.msra.mxu0 %v947
          %990 = vmatprep.subr.mxu0 0.0
          %991 = vmatpush1.msra.mxu0 %v946
          %992 = vmatprep.subr.mxu0 0.0
          %993 = vmatpush1.msra.mxu0 %v945
          %994 = vmatprep.subr.mxu0 0.0
          %995 = vmatpush2.msra.mxu0 0.0
          %996 = vmatprep.subr.mxu0 0.0
          %997 = vmatpush2.msra.mxu0 0.0
          %998 = vmatprep.subr.mxu0 0.0
          %999 = vmatpush2.msra.mxu0 0.0
          %1000 = vmatprep.subr.mxu0 0.0
          %1001 = vmatpush2.msra.mxu0 0.0
          %1002 = vmatprep.subr.mxu0 0.0
          %1003 = vmatpush2.msra.mxu0 0.0
          %1004 = vmatprep.subr.mxu0 0.0
          %1005 = vmatpush2.msra.mxu0 0.0
          %1006 = vmatprep.subr.mxu0 0.0
          %1007 = vmatpush2.msra.mxu0 0.0
          %1008 = vmatprep.subr.mxu0 0.0
          %1009 = vmatpush2.msra.mxu0 0.0
          %1010 = vmatprep.subr.mxu0 0.0
          %1011 = vmatpush2.msra.mxu0 0.0
          %1012 = vmatprep.subr.mxu0 0.0
          %1013 = vmatpush2.msra.mxu0 0.0
          %1014 = vmatprep.subr.mxu0 0.0
          %1015 = vmatpush2.msra.mxu0 0.0
          %1016 = vmatprep.subr.mxu0 0.0
          %1017 = vmatpush2.msra.mxu0 0.0
          %1018 = vmatprep.subr.mxu0 0.0
          %1019 = vmatpush2.msra.mxu0 0.0
          %1020 = vmatprep.subr.mxu0 0.0
          %1021 = vmatpush2.msra.mxu0 0.0
          %1022 = vmatprep.subr.mxu0 0.0
          %1023 = vmatpush2.msra.mxu0 0.0
          %1024 = vmatprep.subr.mxu0 0.0
          %1025 = vmatpush2.msra.mxu0 0.0
          %1026 = vmatprep.mubr.f32.mxu0 0.0
          %1027 = vmatmul.mubr.f32.gmra.mxu0 %v516
          %v1028 = vpop.f32.mrf.mxu0
          %v1029 = vadd.f32 %v961, %v1028
          %v1030 = vpop.f32.mrf.mxu0
          %1031 = vdwg.mxu0
          %v1032 = vld [vmem:[#allocation15] sm:$0xff]
          %v1033 = vld [vmem:[#allocation15 + $0x8] sm:$0xff]
          %v1034 = vld [vmem:[#allocation15 + $0x10] sm:$0xff]
          %v1035 = vld [vmem:[#allocation15 + $0x18] sm:$0xff]
          %v1036 = vld [vmem:[#allocation15 + $0x20] sm:$0xff]
          %v1037 = vld [vmem:[#allocation15 + $0x28] sm:$0xff]
          %v1038 = vld [vmem:[#allocation15 + $0x30] sm:$0xff]
          %v1039 = vld [vmem:[#allocation15 + $0x38] sm:$0xff]
          %v1040 = vld [vmem:[#allocation15 + $0x40] sm:$0xff]
          %v1041 = vld [vmem:[#allocation15 + $0x48] sm:$0xff]
          %v1042 = vld [vmem:[#allocation15 + $0x50] sm:$0xff]
          %v1043 = vld [vmem:[#allocation15 + $0x58] sm:$0xff]
          %v1044 = vld [vmem:[#allocation15 + $0x60] sm:$0xff]
          %v1045 = vld [vmem:[#allocation15 + $0x68] sm:$0xff]
          %v1046 = vld [vmem:[#allocation15 + $0x70] sm:$0xff]
          %v1047 = vld [vmem:[#allocation15 + $0x78] sm:$0xff]
          %1048 = vmatprep.subr.mxu0 0.0
          %1049 = vmatpush1.msra.mxu0 %v1047
          %1050 = vmatprep.subr.mxu0 0.0
          %1051 = vmatpush1.msra.mxu0 %v1046
          %1052 = vmatprep.subr.mxu0 0.0
          %1053 = vmatpush1.msra.mxu0 %v1045
          %1054 = vmatprep.subr.mxu0 0.0
          %1055 = vmatpush1.msra.mxu0 %v1044
          %1056 = vmatprep.subr.mxu0 0.0
          %1057 = vmatpush1.msra.mxu0 %v1043
          %1058 = vmatprep.subr.mxu0 0.0
          %1059 = vmatpush1.msra.mxu0 %v1042
          %1060 = vmatprep.subr.mxu0 0.0
          %1061 = vmatpush1.msra.mxu0 %v1041
          %1062 = vmatprep.subr.mxu0 0.0
          %1063 = vmatpush1.msra.mxu0 %v1040
          %1064 = vmatprep.subr.mxu0 0.0
          %1065 = vmatpush1.msra.mxu0 %v1039
          %1066 = vmatprep.subr.mxu0 0.0
          %1067 = vmatpush1.msra.mxu0 %v1038
          %1068 = vmatprep.subr.mxu0 0.0
          %1069 = vmatpush1.msra.mxu0 %v1037
          %1070 = vmatprep.subr.mxu0 0.0
          %1071 = vmatpush1.msra.mxu0 %v1036
          %1072 = vmatprep.subr.mxu0 0.0
          %1073 = vmatpush1.msra.mxu0 %v1035
          %1074 = vmatprep.subr.mxu0 0.0
          %1075 = vmatpush1.msra.mxu0 %v1034
          %1076 = vmatprep.subr.mxu0 0.0
          %1077 = vmatpush1.msra.mxu0 %v1033
          %1078 = vmatprep.subr.mxu0 0.0
          %1079 = vmatpush1.msra.mxu0 %v1032
          %1080 = vmatprep.subr.mxu0 0.0
          %1081 = vmatpush2.msra.mxu0 0.0
          %1082 = vmatprep.subr.mxu0 0.0
          %1083 = vmatpush2.msra.mxu0 0.0
          %1084 = vmatprep.subr.mxu0 0.0
          %1085 = vmatpush2.msra.mxu0 0.0
          %1086 = vmatprep.subr.mxu0 0.0
          %1087 = vmatpush2.msra.mxu0 0.0
          %1088 = vmatprep.subr.mxu0 0.0
          %1089 = vmatpush2.msra.mxu0 0.0
          %1090 = vmatprep.subr.mxu0 0.0
          %1091 = vmatpush2.msra.mxu0 0.0
          %1092 = vmatprep.subr.mxu0 0.0
          %1093 = vmatpush2.msra.mxu0 0.0
          %1094 = vmatprep.subr.mxu0 0.0
          %1095 = vmatpush2.msra.mxu0 0.0
          %1096 = vmatprep.subr.mxu0 0.0
          %1097 = vmatpush2.msra.mxu0 0.0
          %1098 = vmatprep.subr.mxu0 0.0
          %1099 = vmatpush2.msra.mxu0 0.0
          %1100 = vmatprep.subr.mxu0 0.0
          %1101 = vmatpush2.msra.mxu0 0.0
          %1102 = vmatprep.subr.mxu0 0.0
          %1103 = vmatpush2.msra.mxu0 0.0
          %1104 = vmatprep.subr.mxu0 0.0
          %1105 = vmatpush2.msra.mxu0 0.0
          %1106 = vmatprep.subr.mxu0 0.0
          %1107 = vmatpush2.msra.mxu0 0.0
          %1108 = vmatprep.subr.mxu0 0.0
          %1109 = vmatpush2.msra.mxu0 0.0
          %1110 = vmatprep.subr.mxu0 0.0
          %1111 = vmatpush2.msra.mxu0 0.0
          %1112 = vmatprep.mubr.f32.mxu0 0.0
          %1113 = vmatmul.mubr.f32.gmra.mxu0 %v944
          %v1114 = vpop.f32.mrf.mxu0
          %v1115 = vadd.f32 0.0, %v1114
          %v1116 = vpop.f32.mrf.mxu0
          %1117 = vdwg.mxu0
          %v1118 = vlaneseq
          %v1119 = vshrl.u32 %v1118, 7
          %v1120 = vsub.s32 0, %v1119
          %v1121 = vrot.slane %v1029, %v1120
          %v1122 = vadd.f32 %v1121, %v1115
          %v1123 = vxor.u32 %v1122, 2147483648
          %v1124 = vmul.f32 %v1123, 1.442695
          %v1125 = vpow.pop %v1124
          %v1126 = vadd.f32 %v1125, 1.0
          %v1127 = vrcp.pop %v1126
          %v1128 = vmul.f32 1.0, %v1127
          %v1129 = vlaneseq
          %v1130 = vshrl.u32 %v1129, 7
          %v1131 = vmul.f32 %v921, 1.442695
          %v1132 = vpow.pop %v1131
          %v1133 = vstv %s929
          %vm1134 = vcmp.lt.s32.totalorder %v1130, %v1133
          %v1135 = vmul.f32 %v1128, 1.442695
          %v1136 = vpow.pop %v1135
          %v1137 = vsel %vm1134, %v1136, 0.0
          %v1138 = vrot.slane %v1137, 4
          %v1139 = vadd.f32 %v1137, %v1138
          %v1140 = vrot.slane %v1139, 2
          %v1141 = vadd.f32 %v1139, %v1140
          %v1142 = vrot.slane %v1141, 1
          %v1143 = vadd.f32 %v1141, %v1142
          %v1144 = vadd.f32 %v1132, %v1143
          %v1145 = vrcp.pop %v1144
          %v1146 = vmul.f32 %v1132, %v928
          %v1147 = vmul.f32 %v1137, %v944
          %v1148 = vrot.slane %v1147, 4
          %v1149 = vadd.f32 %v1147, %v1148
          %v1150 = vrot.slane %v1149, 2
          %v1151 = vadd.f32 %v1149, %v1150
          %v1152 = vrot.slane %v1151, 1
          %v1153 = vadd.f32 %v1151, %v1152
          %v1154 = vadd.f32 %v1146, %v1153
          %v1155 = vmul.f32 %v1154, %v1145
          %1156 = vst [vmem:[#allocation3] sm:$0x1] %v1155
        $region96: #{tpu_custom_call.1} parent=59 // pred_fallthru
          _
        %v1157 = vld [vmem:[#allocation3] sm:$0x1]
        %v1158 = vtanh.pop %v1157
        %v1159 = vmul.f32 %v927, %v1158
        %1160 = vst [vmem:[#allocation2] sm:$0x1] %v1159
        %1161 = vst [vmem:[%s501] sm:$0x1] %v1159
        %1162 = vst [vmem:[%s507] sm:$0x1] %v1157
        %s1163 = sand.u32 %s270, 1
        %s1164 = scalar_lea.sflag [#allocation8], %s1163
        %s1165 = sand.u32 %s270, 1
        %s1166 = scalar_lea.vmem [#allocation17], %s1165
        %s1167 = sand.u32 %s296, 1
        %s1168 = scalar_lea.sflag [#allocation19], %s1167
        %s1169 = sand.u32 %s296, 1
        %s1170 = scalar_lea.vmem [#allocation18], %s1169
        // Predicated region
        $region97: #{tpu_custom_call.1} parent=59 // pred_check
          %p1171 = pneg %p280
        $region98: #{tpu_custom_call.1} parent=59 // pred_check_branch
          %1173 = sbr.rel (%p1171) target = $region100
        $region99: #{tpu_custom_call.1} parent=59 // pred_region
          %s1175 = ssub.s32 16, 16
          %1176 = vsyncadd %s1164, %s1175
          %s1177 = smul.addr %s42, 16
          %s1178 = scalar_lea.hbm %s11, %s1177
          %s1180 = sshll.u32 %s1166, 4
          %s1181 = int_to_ptr.vmem [resolvable:$true] %s1180
          %1183 = dma.vmem_to_hbm [thread:$0]  %s1181, 16, %s1178, %s1164
        $region100: #{tpu_custom_call.1} parent=59 // pred_fallthru
          _
        // Predicated region
        $region101: #{tpu_custom_call.1} parent=59 // pred_check
          %p1184 = pneg %p306
        $region102: #{tpu_custom_call.1} parent=59 // pred_check_branch
          %1186 = sbr.rel (%p1184) target = $region104
        $region103: #{tpu_custom_call.1} parent=59 // pred_region
          %s1188 = ssub.s32 16, 16
          %1189 = vsyncadd %s1168, %s1188
          %s1190 = smul.addr %s42, 16
          %s1191 = scalar_lea.hbm %s12, %s1190
          %s1193 = sshll.u32 %s1170, 4
          %s1194 = int_to_ptr.vmem [resolvable:$true] %s1193
          %1196 = dma.vmem_to_hbm [thread:$0]  %s1194, 16, %s1191, %s1168
        $region104: #{tpu_custom_call.1} parent=59 // pred_fallthru
          _
      $region60: #{tpu_custom_call.1} parent=5 // pred_fallthru
        _
      %p1197 = scmp.le.s32.totalorder 2, %s37
      // Predicated region
      $region105: #{tpu_custom_call.1} parent=5 // pred_check
        %p1198 = pneg %p1197
      $region106: #{tpu_custom_call.1} parent=5 // pred_check_branch
        %1200 = sbr.rel (%p1198) target = $region108
      $region107: #{tpu_custom_call.1} parent=5 // pred_region
        %s1201 = ssub.s32 %s37, 2
        // Predicated region
        $region109: #{tpu_custom_call.1} parent=107 // pred_check
          %p1202 = pneg %p286
        $region110: #{tpu_custom_call.1} parent=107 // pred_check_branch
          %1204 = sbr.rel (%p1202) target = $region112
        $region111: #{tpu_custom_call.1} parent=107 // pred_region
          %s1205 = sand.u32 %s271, 1
          %s1206 = scalar_lea.sflag [#allocation8], %s1205
          %s1207 = sand.u32 %s271, 1
          %s1208 = scalar_lea.vmem [#allocation17], %s1207
          %1209 = dma.done %s1206, 16
        $region112: #{tpu_custom_call.1} parent=107 // pred_fallthru
          _
        // Predicated region
        $region113: #{tpu_custom_call.1} parent=107 // pred_check
          %p1210 = pneg %p312
        $region114: #{tpu_custom_call.1} parent=107 // pred_check_branch
          %1212 = sbr.rel (%p1210) target = $region116
        $region115: #{tpu_custom_call.1} parent=107 // pred_region
          %s1213 = sand.u32 %s297, 1
          %s1214 = scalar_lea.sflag [#allocation19], %s1213
          %s1215 = sand.u32 %s297, 1
          %s1216 = scalar_lea.vmem [#allocation18], %s1215
          %1217 = dma.done %s1214, 16
        $region116: #{tpu_custom_call.1} parent=107 // pred_fallthru
          _
      $region108: #{tpu_custom_call.1} parent=5 // pred_fallthru
        _
    $region6: #{tpu_custom_call.1} parent=1 // loop_footer
      %s41 = sadd.s32 1, %s37
    $region7: #{tpu_custom_call.1} parent=1 // loop_footer_branch
      %36 = sbr.rel target = $region3
    $region8: #{tpu_custom_call.1} parent=1 // loop_exit
      _
    %1218 = vsyncpa [#allocation7], 1
    %s1219 = scalar_lea.sflag [#allocation7], 1
    %1220 = vsyncpa %s1219, 1
    %1221 = vsyncpa [#allocation10], 1
    %s1222 = scalar_lea.sflag [#allocation10], 1
    %1223 = vsyncpa %s1222, 1
    %1224 = vsyncpa [#allocation13], 1
    %1225 = vsyncpa [#allocation16], 1
    %1226 = vsyncpa [#allocation8], 1
    %s1227 = scalar_lea.sflag [#allocation8], 1
    %1228 = vsyncpa %s1227, 1
    %1229 = vsyncpa [#allocation19], 1
    %s1230 = scalar_lea.sflag [#allocation19], 1
    %1231 = vsyncpa %s1230, 1

</llo_original>
